<compile_context>
chip_gen: v5e
topology: v5e:2x2
jax: 0.10.0
libtpu: 0.0.40
codegen_flags: <defaults>
</compile_context>

<pallas_src>
import functools
import math

import jax
import jax.numpy as jnp
from jax import lax
from jax.experimental import pallas as pl
from jax.experimental.pallas import tpu as pltpu

LANE = 128   # feature / column axes padded to 128 lanes (lane-dense, unmasked stores)
ROW = 16     # row axes padded to 16 sublanes (bf16 tile) so bf16 operands are aligned


def _round_up(x, m):
    return ((x + m - 1) // m) * m


# ----------------------------------------------------------------------------------
# In-kernel helpers
# ----------------------------------------------------------------------------------
def _leaky(y):
    return jnp.maximum(y, 0.01 * y)                      # LeakyReLU(0.01), one VPU select


def _dot(a_bf16, w_bf16):
    return jnp.dot(a_bf16, w_bf16, preferred_element_type=jnp.float32)


def _scatter(oh, x):
    # zeros(N, d).index_add(0, seg, x) == oh^T @ x  (edge axis contracted on the MXU)
    return lax.dot_general(oh, x, (((0,), (0,)), ((), ())),
                           preferred_element_type=jnp.float32)


def _one_hot(idx_col, n, dtype=jnp.bfloat16):
    # idx_col: (R, 1) int32; padded rows hold -1 -> all-zero one-hot row.
    iota = lax.broadcasted_iota(jnp.int32, (idx_col.shape[0], n), 1)
    return (idx_col == iota).astype(jnp.float32).astype(dtype)


# ----------------------------------------------------------------------------------
# The fused kernel: one grid step == one propagation step (+ readout on the last step)
# ----------------------------------------------------------------------------------
def _coatt_step_kernel(
        nodes0_ref, edges_ref, inn_seg_ref, inn_idx_ref, out_a_ref, out_b_ref, gseg_ref,
        mp_nw_ref, mp_ew1_ref, mp_eb1_ref, mp_ew2_ref, mp_eb2_ref,
        co_kw_ref, co_vw_ref, co_ow_ref, co_ob_ref, ln_g_ref, ln_b_ref,
        ro_w_ref, ro_b_ref,
        g_out_ref,
        node_state,
        *, d_hid, inv_temp, eps):
    step = pl.program_id(0)
    ntot, dp = node_state.shape
    inv_d = jnp.float32(1.0 / d_hid)
    inv_temp = jnp.float32(inv_temp)
    eps = jnp.float32(eps)

    @pl.when(step == 0)
    def _():
        node_state[...] = nodes0_ref[...]

    node = node_state[...]                               # (ntot, dp) f32, resident in VMEM
    node_b = node.astype(jnp.bfloat16)

    # One-hot gather/scatter masks built in-register (bf16 for the MXU, bool for softmax).
    inn_seg_oh = _one_hot(inn_seg_ref[...], ntot)        # (etot, ntot)
    inn_idx_oh = _one_hot(inn_idx_ref[...], ntot)        # (etot, ntot)
    iota_n = lax.broadcasted_iota(jnp.int32, (out_a_ref.shape[0], ntot), 1)
    out_a_bool = out_a_ref[...] == iota_n                # (2*eop, ntot) bool
    out_a_f32 = out_a_bool.astype(jnp.float32)
    out_a_oh = out_a_f32.astype(jnp.bfloat16)
    out_b_oh = _one_hot(out_b_ref[...], ntot)            # (2*eop, ntot)

    # ---------------- message passing (both graphs fused on the concatenated axes) ----------------
    e = _leaky(_dot(edges_ref[...], mp_ew1_ref[0]) + mp_eb1_ref[0])
    e = _leaky(_dot(e.astype(jnp.bfloat16), mp_ew2_ref[0]) + mp_eb2_ref[0])
    m = _dot(node_b, mp_nw_ref[0])                              # node_proj (bias=False)
    m = _dot(inn_idx_oh, m.astype(jnp.bfloat16))                # msg.index_select(0, idx_j)
    inner = _scatter(inn_seg_oh, (m * e).astype(jnp.bfloat16))  # index_add(0, seg_i, msg*edge)

    # ---------------- co-attention (both directions fused; shared key/val/out weights) ----------------
    k = _dot(node_b, co_kw_ref[0]).astype(jnp.bfloat16)
    v = _dot(node_b, co_vw_ref[0]).astype(jnp.bfloat16)
    ctr = _dot(out_a_oh, k)     # rows [0,eop): key(node1)[seg_i1], rows [eop,2eop): key(node2)[seg_i2]
    nbr = _dot(out_b_oh, v)     # rows [0,eop): val(node2)[seg_i2], rows [eop,2eop): val(node1)[seg_i1]
    eop = ctr.shape[0] // 2
    trans = jnp.sum(ctr[:eop] * ctr[eop:], axis=1, keepdims=True)        # (eop, 1) logits
    trans2 = jnp.concatenate([trans, trans], axis=0)                     # duplicated per direction
    masked = jnp.where(out_a_bool, trans2, jnp.float32(-1e30))           # (2*eop, ntot)
    seg_max = jnp.max(masked, axis=0, keepdims=True)                     # per-segment max
    lmax = jnp.sum(jnp.where(out_a_bool, seg_max, jnp.float32(0.0)),
                   axis=1, keepdims=True)                                # seg_max[seg_i]
    e_att = jnp.exp((trans2 - lmax) * inv_temp)                          # (2*eop, 1)
    # Node-side softmax normalisation: scatter numerator & denominator, divide once per node.
    num = _scatter(out_a_oh, (e_att * nbr).astype(jnp.bfloat16))         # (ntot, dp)
    den = _scatter(out_a_f32, e_att)                                     # (ntot, 1)
    outer = num * pl.reciprocal(den + jnp.float32(1e-8))                 # exact reciprocal
    outer = _leaky(_dot(outer.astype(jnp.bfloat16), co_ow_ref[0]) + co_ob_ref[0])

    # ---------------- residual update + LayerNorm (padded lanes of s are zero) ----------------
    s = node + inner + outer
    mu = jnp.sum(s, axis=1, keepdims=True) * inv_d
    var = jnp.sum(s * s, axis=1, keepdims=True) * inv_d - mu * mu
    new_node = (s - mu) * lax.rsqrt(var + eps) * ln_g_ref[0] + ln_b_ref[0]
    node_state[...] = new_node

    # ---------------- readout on the last step: one lane-dense scatter for both graphs ----------------
    @pl.when(step == pl.num_programs(0) - 1)
    def _():
        g_oh = _one_hot(gseg_ref[...], g_out_ref.shape[0])               # (ntot, gp)
        r = _leaky(_dot(new_node.astype(jnp.bfloat16), ro_w_ref[...]) + ro_b_ref[...])
        g_out_ref[...] = _scatter(g_oh, r.astype(jnp.bfloat16))          # (gp, rp) f32 slab


# ----------------------------------------------------------------------------------
# Parameters (deterministic init, shapes from the PyTorch __init__)
# ----------------------------------------------------------------------------------
def _xavier_normal(key, shape):
    fan_in, fan_out = shape
    std = math.sqrt(2.0 / (fan_in + fan_out))
    return std * jax.random.normal(key, shape, jnp.float32)


def init_params(key, d_hid, d_readout, n_prop_step, n_head=1):
    assert n_head == 1, "fused kernel implements the single-head 'res' configuration"
    keys = jax.random.split(key, n_prop_step * 6 + 1)
    ki = iter(keys)
    steps = []
    for _ in range(n_prop_step):
        d_node = d_hid  # update_method='res' -> x_d_node(step) == 1
        steps.append({
            "mp_node_w": _xavier_normal(next(ki), (d_node, d_hid)),      # bias=False
            "mp_edge_w1": _xavier_normal(next(ki), (d_hid, d_hid)),
            "mp_edge_b1": jnp.zeros((1, d_hid), jnp.float32),
            "mp_edge_w2": _xavier_normal(next(ki), (d_hid, d_hid)),
            "mp_edge_b2": jnp.zeros((1, d_hid), jnp.float32),
            "coat_key_w": _xavier_normal(next(ki), (d_node, d_node * n_head)),
            "coat_val_w": _xavier_normal(next(ki), (d_node, d_node * n_head)),
            "coat_out_w": _xavier_normal(next(ki), (d_node * n_head, d_hid)),
            "coat_out_b": jnp.zeros((1, d_hid), jnp.float32),
            "ln_g": jnp.ones((1, d_node), jnp.float32),
            "ln_b": jnp.zeros((1, d_node), jnp.float32),
        })
    return {"steps": steps,
            "ro_w": _xavier_normal(next(ki), (d_hid, d_readout)),
            "ro_b": jnp.zeros((1, d_readout), jnp.float32)}


# ----------------------------------------------------------------------------------
# Host-side wrapper: concatenate graph pair, pad, stack per-step weights, one pallas_call
# ----------------------------------------------------------------------------------
def _place_rows(rows, cols, blocks, dtype):
    out = jnp.zeros((rows, cols), dtype)
    for off, arr in blocks:
        arr = jnp.asarray(arr, dtype)
        out = out.at[off:off + arr.shape[0], :arr.shape[1]].set(arr)
    return out


def _place_idx(rows, blocks):
    out = jnp.full((rows, 1), -1, jnp.int32)
    for off, arr in blocks:
        arr = jnp.asarray(arr, jnp.int32).reshape(-1)
        out = out.at[off:off + arr.shape[0], 0].set(arr)
    return out


def coatt_mpn_forward(params, d_hid, d_readout, n_batch,
                      seg_g1, node1, edge1, inn_seg_i1, inn_idx_j1, out_seg_i1, out_idx_j1,
                      seg_g2, node2, edge2, inn_seg_i2, inn_idx_j2, out_seg_i2, out_idx_j2):
    del out_idx_j1, out_idx_j2  # only layout metadata for torch's dense segment_max trick
    n_steps = len(params["steps"])
    N1, N2 = node1.shape[0], node2.shape[0]
    E1, E2 = edge1.shape[0], edge2.shape[0]
    EO = out_seg_i1.shape[0]

    dp = _round_up(d_hid, LANE)
    rp = _round_up(d_readout, LANE)
    gp = _round_up(2 * n_batch, LANE)        # lane-dense readout one-hot / output slab
    n1p = _round_up(N1, ROW)
    n2p = _round_up(N2, ROW)
    ntot = n1p + n2p                          # concatenated node axis (side2 offset n1p)
    e1p = _round_up(E1, ROW)
    e2p = _round_up(E2, ROW)
    etot = e1p + e2p                          # concatenated inner-edge axis
    eop = _round_up(EO, ROW)                  # outer edges (each direction)

    nodes0 = _place_rows(ntot, dp, [(0, node1), (n1p, node2)], jnp.float32)
    edges = _place_rows(etot, dp, [(0, edge1), (e1p, edge2)], jnp.bfloat16)
    inn_seg = _place_idx(etot, [(0, inn_seg_i1), (e1p, jnp.asarray(inn_seg_i2) + n1p)])
    inn_idx = _place_idx(etot, [(0, inn_idx_j1), (e1p, jnp.asarray(inn_idx_j2) + n1p)])
    # out_a: rows [0,eop) -> seg_i1 (centre 1 / scatter 1), rows [eop,2eop) -> seg_i2 (centre 2 / scatter 2)
    out_a = _place_idx(2 * eop, [(0, out_seg_i1), (eop, jnp.asarray(out_seg_i2) + n1p)])
    # out_b: neighbour gather -> rows [0,eop) read node2 values, rows [eop,2eop) read node1 values
    out_b = _place_idx(2 * eop, [(0, jnp.asarray(out_seg_i2) + n1p), (eop, out_seg_i1)])
    gseg = _place_idx(ntot, [(0, seg_g1), (n1p, jnp.asarray(seg_g2) + n_batch)])

    def stack_w(name):
        return jnp.stack([_place_rows(dp, dp, [(0, sp[name])], jnp.bfloat16)
                          for sp in params["steps"]])

    def stack_b(name):
        return jnp.stack([_place_rows(1, dp, [(0, sp[name])], jnp.float32)
                          for sp in params["steps"]])

    args = (nodes0, edges, inn_seg, inn_idx, out_a, out_b, gseg,
            stack_w("mp_node_w"), stack_w("mp_edge_w1"), stack_b("mp_edge_b1"),
            stack_w("mp_edge_w2"), stack_b("mp_edge_b2"),
            stack_w("coat_key_w"), stack_w("coat_val_w"),
            stack_w("coat_out_w"), stack_b("coat_out_b"),
            stack_b("ln_g"), stack_b("ln_b"),
            _place_rows(dp, rp, [(0, params["ro_w"])], jnp.bfloat16),
            _place_rows(1, rp, [(0, params["ro_b"])], jnp.float32))

    def const2(shape):
        return pl.BlockSpec(shape, lambda s: (0, 0))

    def per_step(shape):
        return pl.BlockSpec((1,) + shape, lambda s: (s, 0, 0))

    in_specs = [
        const2((ntot, dp)), const2((etot, dp)),
        const2((etot, 1)), const2((etot, 1)),
        const2((2 * eop, 1)), const2((2 * eop, 1)), const2((ntot, 1)),
        per_step((dp, dp)), per_step((dp, dp)), per_step((1, dp)),
        per_step((dp, dp)), per_step((1, dp)),
        per_step((dp, dp)), per_step((dp, dp)), per_step((dp, dp)), per_step((1, dp)),
        per_step((1, dp)), per_step((1, dp)),
        const2((dp, rp)), const2((1, rp)),
    ]

    # Generation-aware VMEM limit (leave headroom for compiler scratch / double buffers).
    try:
        vmem_cap = pltpu.get_tpu_info().vmem_capacity_bytes
    except Exception:  # pragma: no cover - fallback if query is unavailable
        vmem_cap = 64 * 1024 * 1024
    vmem_limit = min(int(vmem_cap) * 3 // 4, 112 * 1024 * 1024)

    # Advisory scheduling hint from real (un-padded) sizes.
    ei, no, eo = E1 + E2, N1 + N2, EO
    flops = 2 * n_steps * (2 * ei * d_hid * d_hid + 4 * no * d_hid * d_hid
                           + 2 * ei * no * d_hid + 6 * eo * no * d_hid) \
        + 2 * no * d_hid * d_readout + 4 * no * n_batch * d_readout
    bytes_accessed = sum(int(a.size) * a.dtype.itemsize for a in args) + gp * rp * 4
    cost = pl.CostEstimate(flops=int(flops),
                           transcendentals=int(n_steps * (2 * eo + no)),
                           bytes_accessed=int(bytes_accessed))

    kernel = functools.partial(_coatt_step_kernel, d_hid=d_hid,
                               inv_temp=1.0 / math.sqrt(d_hid), eps=1e-5)

    g_out = pl.pallas_call(
        kernel,
        out_shape=jax.ShapeDtypeStruct((gp, rp), jnp.float32),
        grid=(n_steps,),
        in_specs=in_specs,
        out_specs=const2((gp, rp)),
        scratch_shapes=[pltpu.VMEM((ntot, dp), jnp.float32)],
        compiler_params=pltpu.CompilerParams(
            dimension_semantics=("arbitrary",),
            vmem_limit_bytes=vmem_limit),
        cost_estimate=cost,
    )(*args)

    g1 = g_out[:n_batch, :d_readout]
    g2 = g_out[n_batch:2 * n_batch, :d_readout]
    return g1, g2


# ----------------------------------------------------------------------------------
# Example run
# ----------------------------------------------------------------------------------
if __name__ == "__main__":
    d_hid, d_readout, n_prop_step, n_head = 32, 64, 2, 1
    n_batch = 2
    N1, N2 = 12, 10          # nodes per side
    E1, E2 = 24, 20          # inner edges per side
    EO = 16                  # outer (cross-graph) edges

    key = jax.random.PRNGKey(0)
    ks = jax.random.split(key, 12)

    node1 = jax.random.normal(ks[0], (N1, d_hid), jnp.float32)
    node2 = jax.random.normal(ks[1], (N2, d_hid), jnp.float32)
    edge1 = jax.random.normal(ks[2], (E1, d_hid), jnp.float32)
    edge2 = jax.random.normal(ks[3], (E2, d_hid), jnp.float32)

    inn_seg_i1 = jax.random.randint(ks[4], (E1,), 0, N1)
    inn_idx_j1 = jax.random.randint(ks[5], (E1,), 0, N1)
    inn_seg_i2 = jax.random.randint(ks[6], (E2,), 0, N2)
    inn_idx_j2 = jax.random.randint(ks[7], (E2,), 0, N2)

    out_seg_i1 = jax.random.randint(ks[8], (EO,), 0, N1)
    out_seg_i2 = jax.random.randint(ks[9], (EO,), 0, N2)
    out_idx_j1 = jnp.arange(EO, dtype=jnp.int32)   # unique dense positions per edge
    out_idx_j2 = jnp.arange(EO, dtype=jnp.int32)

    seg_g1 = jnp.array([0] * 6 + [1] * 6, dtype=jnp.int32)
    seg_g2 = jnp.array([0] * 5 + [1] * 5, dtype=jnp.int32)

    params = init_params(jax.random.PRNGKey(42), d_hid, d_readout, n_prop_step, n_head)

    g1_vec, g2_vec = coatt_mpn_forward(
        params, d_hid, d_readout, n_batch,
        seg_g1, node1, edge1, inn_seg_i1, inn_idx_j1, out_seg_i1, out_idx_j1,
        seg_g2, node2, edge2, inn_seg_i2, inn_idx_j2, out_seg_i2, out_idx_j2)

    jax.block_until_ready((g1_vec, g2_vec))
    assert g1_vec.shape == (n_batch, d_readout) and g2_vec.shape == (n_batch, d_readout)
    assert bool(jnp.all(jnp.isfinite(g1_vec))) and bool(jnp.all(jnp.isfinite(g2_vec)))
    print("KERNEL_OK")
</pallas_src>

<mosaic_0001>
module attributes {stable_mosaic.version = 11 : i64} {
  func.func @_coatt_step_kernel(%arg0: i32, %arg1: memref<32x128xf32, #tpu.memory_space<vmem>>, %arg2: memref<64x128xbf16, #tpu.memory_space<vmem>>, %arg3: memref<64x1xi32, #tpu.memory_space<vmem>>, %arg4: memref<64x1xi32, #tpu.memory_space<vmem>>, %arg5: memref<32x1xi32, #tpu.memory_space<vmem>>, %arg6: memref<32x1xi32, #tpu.memory_space<vmem>>, %arg7: memref<32x1xi32, #tpu.memory_space<vmem>>, %arg8: memref<1x128x128xbf16, #tpu.memory_space<vmem>>, %arg9: memref<1x128x128xbf16, #tpu.memory_space<vmem>>, %arg10: memref<1x1x128xf32, #tpu.memory_space<vmem>>, %arg11: memref<1x128x128xbf16, #tpu.memory_space<vmem>>, %arg12: memref<1x1x128xf32, #tpu.memory_space<vmem>>, %arg13: memref<1x128x128xbf16, #tpu.memory_space<vmem>>, %arg14: memref<1x128x128xbf16, #tpu.memory_space<vmem>>, %arg15: memref<1x128x128xbf16, #tpu.memory_space<vmem>>, %arg16: memref<1x1x128xf32, #tpu.memory_space<vmem>>, %arg17: memref<1x1x128xf32, #tpu.memory_space<vmem>>, %arg18: memref<1x1x128xf32, #tpu.memory_space<vmem>>, %arg19: memref<128x128xbf16, #tpu.memory_space<vmem>>, %arg20: memref<1x128xf32, #tpu.memory_space<vmem>>, %arg21: memref<128x128xf32, #tpu.memory_space<vmem>>, %arg22: memref<32x128xf32, #tpu.memory_space<vmem>>) attributes {dimension_semantics = [#tpu.dimension_semantics<arbitrary>], iteration_bounds = array<i64: 2>, scalar_prefetch = 0 : i64, scratch_operands = 1 : i64, tpu.core_type = #tpu.core_type<tc>, window_params = [{pipeline_mode = #tpu.pipeline_mode<synchronous>, transform_indices = @transform_0, window_bounds = array<i64: 32, 128>}, {pipeline_mode = #tpu.pipeline_mode<synchronous>, transform_indices = @transform_1, window_bounds = array<i64: 64, 128>}, {pipeline_mode = #tpu.pipeline_mode<synchronous>, transform_indices = @transform_2, window_bounds = array<i64: 64, 1>}, {pipeline_mode = #tpu.pipeline_mode<synchronous>, transform_indices = @transform_3, window_bounds = array<i64: 64, 1>}, {pipeline_mode = #tpu.pipeline_mode<synchronous>, transform_indices = @transform_4, window_bounds = array<i64: 32, 1>}, {pipeline_mode = #tpu.pipeline_mode<synchronous>, transform_indices = @transform_5, window_bounds = array<i64: 32, 1>}, {pipeline_mode = #tpu.pipeline_mode<synchronous>, transform_indices = @transform_6, window_bounds = array<i64: 32, 1>}, {transform_indices = @transform_7, window_bounds = array<i64: 1, 128, 128>}, {transform_indices = @transform_8, window_bounds = array<i64: 1, 128, 128>}, {transform_indices = @transform_9, window_bounds = array<i64: 1, 1, 128>}, {transform_indices = @transform_10, window_bounds = array<i64: 1, 128, 128>}, {transform_indices = @transform_11, window_bounds = array<i64: 1, 1, 128>}, {transform_indices = @transform_12, window_bounds = array<i64: 1, 128, 128>}, {transform_indices = @transform_13, window_bounds = array<i64: 1, 128, 128>}, {transform_indices = @transform_14, window_bounds = array<i64: 1, 128, 128>}, {transform_indices = @transform_15, window_bounds = array<i64: 1, 1, 128>}, {transform_indices = @transform_16, window_bounds = array<i64: 1, 1, 128>}, {transform_indices = @transform_17, window_bounds = array<i64: 1, 1, 128>}, {pipeline_mode = #tpu.pipeline_mode<synchronous>, transform_indices = @transform_18, window_bounds = array<i64: 128, 128>}, {pipeline_mode = #tpu.pipeline_mode<synchronous>, transform_indices = @transform_19, window_bounds = array<i64: 1, 128>}, {pipeline_mode = #tpu.pipeline_mode<synchronous>, transform_indices = @transform_20, window_bounds = array<i64: 128, 128>}]} {
    %c0_i32 = arith.constant 0 : i32
    %0 = arith.cmpi eq, %arg0, %c0_i32 : i32
    %1 = arith.extui %0 : i1 to i32
    %c0_i32_0 = arith.constant 0 : i32
    %2 = arith.cmpi ne, %1, %c0_i32_0 : i32
    scf.if %2 {
      %c0_74 = arith.constant 0 : index
      %c0_75 = arith.constant 0 : index
      %148 = vector.load %arg1[%c0_74, %c0_75] : memref<32x128xf32, #tpu.memory_space<vmem>>, vector<32x128xf32>
      %c0_76 = arith.constant 0 : index
      %c0_77 = arith.constant 0 : index
      %149 = vector.load %arg22[%c0_76, %c0_77] : memref<32x128xf32, #tpu.memory_space<vmem>>, vector<32x128xf32>
      tpu.vector_store %arg22[%c0_76, %c0_77], %148 {strides = array<i32>} : memref<32x128xf32, #tpu.memory_space<vmem>>, vector<32x128xf32>,
    } else {
    }
    %c0 = arith.constant 0 : index
    %c0_1 = arith.constant 0 : index
    %3 = vector.load %arg22[%c0, %c0_1] : memref<32x128xf32, #tpu.memory_space<vmem>>, vector<32x128xf32>
    %4 = arith.truncf %3 : vector<32x128xf32> to vector<32x128xbf16>
    %c0_2 = arith.constant 0 : index
    %c0_3 = arith.constant 0 : index
    %5 = vector.load %arg3[%c0_2, %c0_3] : memref<64x1xi32, #tpu.memory_space<vmem>>, vector<64x1xi32>
    %6 = tpu.iota {dimensions = array<i32: 1>} : vector<64x32xi32>
    %7 = vector.broadcast %5 : vector<64x1xi32> to vector<64x32xi32>
    %8 = arith.cmpi eq, %7, %6 : vector<64x32xi32>
    %9 = arith.extui %8 : vector<64x32xi1> to vector<64x32xi32>
    %10 = arith.sitofp %9 : vector<64x32xi32> to vector<64x32xf32>
    %11 = arith.truncf %10 : vector<64x32xf32> to vector<64x32xbf16>
    %c0_4 = arith.constant 0 : index
    %c0_5 = arith.constant 0 : index
    %12 = vector.load %arg4[%c0_4, %c0_5] : memref<64x1xi32, #tpu.memory_space<vmem>>, vector<64x1xi32>
    %13 = tpu.iota {dimensions = array<i32: 1>} : vector<64x32xi32>
    %14 = vector.broadcast %12 : vector<64x1xi32> to vector<64x32xi32>
    %15 = arith.cmpi eq, %14, %13 : vector<64x32xi32>
    %16 = arith.extui %15 : vector<64x32xi1> to vector<64x32xi32>
    %17 = arith.sitofp %16 : vector<64x32xi32> to vector<64x32xf32>
    %18 = arith.truncf %17 : vector<64x32xf32> to vector<64x32xbf16>
    %19 = tpu.iota {dimensions = array<i32: 1>} : vector<32x32xi32>
    %c0_6 = arith.constant 0 : index
    %c0_7 = arith.constant 0 : index
    %20 = vector.load %arg5[%c0_6, %c0_7] : memref<32x1xi32, #tpu.memory_space<vmem>>, vector<32x1xi32>
    %21 = vector.broadcast %20 : vector<32x1xi32> to vector<32x32xi32>
    %22 = arith.cmpi eq, %21, %19 : vector<32x32xi32>
    %23 = arith.extui %22 : vector<32x32xi1> to vector<32x32xi32>
    %24 = arith.sitofp %23 : vector<32x32xi32> to vector<32x32xf32>
    %25 = arith.truncf %24 : vector<32x32xf32> to vector<32x32xbf16>
    %c0_8 = arith.constant 0 : index
    %c0_9 = arith.constant 0 : index
    %26 = vector.load %arg6[%c0_8, %c0_9] : memref<32x1xi32, #tpu.memory_space<vmem>>, vector<32x1xi32>
    %27 = tpu.iota {dimensions = array<i32: 1>} : vector<32x32xi32>
    %28 = vector.broadcast %26 : vector<32x1xi32> to vector<32x32xi32>
    %29 = arith.cmpi eq, %28, %27 : vector<32x32xi32>
    %30 = arith.extui %29 : vector<32x32xi1> to vector<32x32xi32>
    %31 = arith.sitofp %30 : vector<32x32xi32> to vector<32x32xf32>
    %32 = arith.truncf %31 : vector<32x32xf32> to vector<32x32xbf16>
    %c0_10 = arith.constant 0 : index
    %c0_11 = arith.constant 0 : index
    %33 = vector.load %arg2[%c0_10, %c0_11] : memref<64x128xbf16, #tpu.memory_space<vmem>>, vector<64x128xbf16>
    %c0_12 = arith.constant 0 : index
    %c0_13 = arith.constant 0 : index
    %c0_14 = arith.constant 0 : index
    %34 = vector.load %arg9[%c0_12, %c0_13, %c0_14] : memref<1x128x128xbf16, #tpu.memory_space<vmem>>, vector<1x128x128xbf16>
    %35 = vector.shape_cast %34 : vector<1x128x128xbf16> to vector<128x128xbf16>
    %cst = arith.constant dense<0.000000e+00> : vector<64x128xf32>
    %36 = tpu.matmul %33, %35, %cst {dimension_numbers = #tpu.dot_dimension_numbers<[1], [0], [0], [1], [0, 0, 1, 1], [], []>} : vector<64x128xbf16>, vector<128x128xbf16>, vector<64x128xf32> -> vector<64x128xf32>
    %c0_15 = arith.constant 0 : index
    %c0_16 = arith.constant 0 : index
    %c0_17 = arith.constant 0 : index
    %37 = vector.load %arg10[%c0_15, %c0_16, %c0_17] : memref<1x1x128xf32, #tpu.memory_space<vmem>>, vector<1x1x128xf32>
    %38 = vector.shape_cast %37 : vector<1x1x128xf32> to vector<1x128xf32>
    %39 = vector.broadcast %38 : vector<1x128xf32> to vector<64x128xf32>
    %40 = arith.addf %36, %39 : vector<64x128xf32>
    %cst_18 = arith.constant 0.00999999977 : f32
    %41 = vector.broadcast %cst_18 : f32 to vector<64x128xf32>
    %42 = arith.mulf %41, %40 : vector<64x128xf32>
    %43 = arith.maximumf %40, %42 : vector<64x128xf32>
    %44 = arith.truncf %43 : vector<64x128xf32> to vector<64x128xbf16>
    %c0_19 = arith.constant 0 : index
    %c0_20 = arith.constant 0 : index
    %c0_21 = arith.constant 0 : index
    %45 = vector.load %arg11[%c0_19, %c0_20, %c0_21] : memref<1x128x128xbf16, #tpu.memory_space<vmem>>, vector<1x128x128xbf16>
    %46 = vector.shape_cast %45 : vector<1x128x128xbf16> to vector<128x128xbf16>
    %cst_22 = arith.constant dense<0.000000e+00> : vector<64x128xf32>
    %47 = tpu.matmul %44, %46, %cst_22 {dimension_numbers = #tpu.dot_dimension_numbers<[1], [0], [0], [1], [0, 0, 1, 1], [], []>} : vector<64x128xbf16>, vector<128x128xbf16>, vector<64x128xf32> -> vector<64x128xf32>
    %c0_23 = arith.constant 0 : index
    %c0_24 = arith.constant 0 : index
    %c0_25 = arith.constant 0 : index
    %48 = vector.load %arg12[%c0_23, %c0_24, %c0_25] : memref<1x1x128xf32, #tpu.memory_space<vmem>>, vector<1x1x128xf32>
    %49 = vector.shape_cast %48 : vector<1x1x128xf32> to vector<1x128xf32>
    %50 = vector.broadcast %49 : vector<1x128xf32> to vector<64x128xf32>
    %51 = arith.addf %47, %50 : vector<64x128xf32>
    %cst_26 = arith.constant 0.00999999977 : f32
    %52 = vector.broadcast %cst_26 : f32 to vector<64x128xf32>
    %53 = arith.mulf %52, %51 : vector<64x128xf32>
    %54 = arith.maximumf %51, %53 : vector<64x128xf32>
    %c0_27 = arith.constant 0 : index
    %c0_28 = arith.constant 0 : index
    %c0_29 = arith.constant 0 : index
    %55 = vector.load %arg8[%c0_27, %c0_28, %c0_29] : memref<1x128x128xbf16, #tpu.memory_space<vmem>>, vector<1x128x128xbf16>
    %56 = vector.shape_cast %55 : vector<1x128x128xbf16> to vector<128x128xbf16>
    %cst_30 = arith.constant dense<0.000000e+00> : vector<32x128xf32>
    %57 = tpu.matmul %4, %56, %cst_30 {dimension_numbers = #tpu.dot_dimension_numbers<[1], [0], [0], [1], [0, 0, 1, 1], [], []>} : vector<32x128xbf16>, vector<128x128xbf16>, vector<32x128xf32> -> vector<32x128xf32>
    %58 = arith.truncf %57 : vector<32x128xf32> to vector<32x128xbf16>
    %cst_31 = arith.constant dense<0.000000e+00> : vector<64x128xf32>
    %59 = tpu.matmul %18, %58, %cst_31 {dimension_numbers = #tpu.dot_dimension_numbers<[1], [0], [0], [1], [0, 0, 1, 1], [], []>} : vector<64x32xbf16>, vector<32x128xbf16>, vector<64x128xf32> -> vector<64x128xf32>
    %60 = arith.mulf %59, %54 : vector<64x128xf32>
    %61 = arith.truncf %60 : vector<64x128xf32> to vector<64x128xbf16>
    %cst_32 = arith.constant dense<0.000000e+00> : vector<32x128xf32>
    %62 = tpu.matmul %11, %61, %cst_32 {dimension_numbers = #tpu.dot_dimension_numbers<[0], [0], [1], [1], [0, 1, 1, 1], [], []>} : vector<64x32xbf16>, vector<64x128xbf16>, vector<32x128xf32> -> vector<32x128xf32>
    %c0_33 = arith.constant 0 : index
    %c0_34 = arith.constant 0 : index
    %c0_35 = arith.constant 0 : index
    %63 = vector.load %arg13[%c0_33, %c0_34, %c0_35] : memref<1x128x128xbf16, #tpu.memory_space<vmem>>, vector<1x128x128xbf16>
    %64 = vector.shape_cast %63 : vector<1x128x128xbf16> to vector<128x128xbf16>
    %cst_36 = arith.constant dense<0.000000e+00> : vector<32x128xf32>
    %65 = tpu.matmul %4, %64, %cst_36 {dimension_numbers = #tpu.dot_dimension_numbers<[1], [0], [0], [1], [0, 0, 1, 1], [], []>} : vector<32x128xbf16>, vector<128x128xbf16>, vector<32x128xf32> -> vector<32x128xf32>
    %66 = arith.truncf %65 : vector<32x128xf32> to vector<32x128xbf16>
    %c0_37 = arith.constant 0 : index
    %c0_38 = arith.constant 0 : index
    %c0_39 = arith.constant 0 : index
    %67 = vector.load %arg14[%c0_37, %c0_38, %c0_39] : memref<1x128x128xbf16, #tpu.memory_space<vmem>>, vector<1x128x128xbf16>
    %68 = vector.shape_cast %67 : vector<1x128x128xbf16> to vector<128x128xbf16>
    %cst_40 = arith.constant dense<0.000000e+00> : vector<32x128xf32>
    %69 = tpu.matmul %4, %68, %cst_40 {dimension_numbers = #tpu.dot_dimension_numbers<[1], [0], [0], [1], [0, 0, 1, 1], [], []>} : vector<32x128xbf16>, vector<128x128xbf16>, vector<32x128xf32> -> vector<32x128xf32>
    %70 = arith.truncf %69 : vector<32x128xf32> to vector<32x128xbf16>
    %cst_41 = arith.constant dense<0.000000e+00> : vector<32x128xf32>
    %71 = tpu.matmul %25, %66, %cst_41 {dimension_numbers = #tpu.dot_dimension_numbers<[1], [0], [0], [1], [0, 0, 1, 1], [], []>} : vector<32x32xbf16>, vector<32x128xbf16>, vector<32x128xf32> -> vector<32x128xf32>
    %cst_42 = arith.constant dense<0.000000e+00> : vector<32x128xf32>
    %72 = tpu.matmul %32, %70, %cst_42 {dimension_numbers = #tpu.dot_dimension_numbers<[1], [0], [0], [1], [0, 0, 1, 1], [], []>} : vector<32x32xbf16>, vector<32x128xbf16>, vector<32x128xf32> -> vector<32x128xf32>
    %73 = vector.extract_strided_slice %71 {offsets = [0, 0], sizes = [16, 128], strides = [1, 1]} : vector<32x128xf32> to vector<16x128xf32>
    %74 = vector.extract_strided_slice %71 {offsets = [16, 0], sizes = [16, 128], strides = [1, 1]} : vector<32x128xf32> to vector<16x128xf32>
    %75 = arith.mulf %73, %74 : vector<16x128xf32>
    %cst_43 = arith.constant dense<0.000000e+00> : vector<16xf32>
    %76 = vector.multi_reduction <add>, %75, %cst_43 [1] : vector<16x128xf32> to vector<16xf32>
    %77 = vector.shape_cast %76 : vector<16xf32> to vector<16x1xf32>
    %78 = tpu.concatenate %77, %77 in 0 : vector<16x1xf32>, vector<16x1xf32> -> vector<32x1xf32>
    %cst_44 = arith.constant -1.000000e+30 : f32
    %79 = vector.shape_cast %78 : vector<32x1xf32> to vector<32x1xf32>
    %80 = vector.broadcast %79 : vector<32x1xf32> to vector<32x32xf32>
    %81 = vector.broadcast %cst_44 : f32 to vector<32x32xf32>
    %82 = arith.select %22, %80, %81 : vector<32x32xi1>, vector<32x32xf32>
    %cst_45 = arith.constant dense<0xFF800000> : vector<32xf32>
    %83 = vector.multi_reduction <maximumf>, %82, %cst_45 [0] : vector<32x32xf32> to vector<32xf32>
    %84 = vector.shape_cast %83 : vector<32xf32> to vector<1x32xf32>
    %cst_46 = arith.constant 0.000000e+00 : f32
    %85 = vector.shape_cast %84 : vector<1x32xf32> to vector<1x32xf32>
    %86 = vector.broadcast %85 : vector<1x32xf32> to vector<32x32xf32>
    %87 = vector.broadcast %cst_46 : f32 to vector<32x32xf32>
    %88 = arith.select %22, %86, %87 : vector<32x32xi1>, vector<32x32xf32>
    %cst_47 = arith.constant dense<0.000000e+00> : vector<32xf32>
    %89 = vector.multi_reduction <add>, %88, %cst_47 [1] : vector<32x32xf32> to vector<32xf32>
    %90 = vector.shape_cast %89 : vector<32xf32> to vector<32x1xf32>
    %91 = arith.subf %78, %90 : vector<32x1xf32>
    %cst_48 = arith.constant 0.176776692 : f32
    %92 = vector.broadcast %cst_48 : f32 to vector<32x1xf32>
    %93 = arith.mulf %91, %92 : vector<32x1xf32>
    %94 = math.exp %93 : vector<32x1xf32>
    %95 = vector.broadcast %94 : vector<32x1xf32> to vector<32x128xf32>
    %96 = arith.mulf %95, %72 : vector<32x128xf32>
    %97 = arith.truncf %96 : vector<32x128xf32> to vector<32x128xbf16>
    %cst_49 = arith.constant dense<0.000000e+00> : vector<32x128xf32>
    %98 = tpu.matmul %25, %97, %cst_49 {dimension_numbers = #tpu.dot_dimension_numbers<[0], [0], [1], [1], [0, 1, 1, 1], [], []>} : vector<32x32xbf16>, vector<32x128xbf16>, vector<32x128xf32> -> vector<32x128xf32>
    %cst_50 = arith.constant dense<0.000000e+00> : vector<32x1xf32>
    %99 = tpu.matmul %24, %94, %cst_50 {dimension_numbers = #tpu.dot_dimension_numbers<[0], [0], [1], [1], [0, 1, 1, 1], [], []>} : vector<32x32xf32>, vector<32x1xf32>, vector<32x1xf32> -> vector<32x1xf32>
    %cst_51 = arith.constant 9.99999993E-9 : f32
    %100 = vector.broadcast %cst_51 : f32 to vector<32x1xf32>
    %101 = arith.addf %99, %100 : vector<32x1xf32>
    %102 = tpu.reciprocal %101 : vector<32x1xf32> -> vector<32x1xf32>
    %103 = vector.broadcast %102 : vector<32x1xf32> to vector<32x128xf32>
    %104 = arith.mulf %98, %103 : vector<32x128xf32>
    %105 = arith.truncf %104 : vector<32x128xf32> to vector<32x128xbf16>
    %c0_52 = arith.constant 0 : index
    %c0_53 = arith.constant 0 : index
    %c0_54 = arith.constant 0 : index
    %106 = vector.load %arg15[%c0_52, %c0_53, %c0_54] : memref<1x128x128xbf16, #tpu.memory_space<vmem>>, vector<1x128x128xbf16>
    %107 = vector.shape_cast %106 : vector<1x128x128xbf16> to vector<128x128xbf16>
    %cst_55 = arith.constant dense<0.000000e+00> : vector<32x128xf32>
    %108 = tpu.matmul %105, %107, %cst_55 {dimension_numbers = #tpu.dot_dimension_numbers<[1], [0], [0], [1], [0, 0, 1, 1], [], []>} : vector<32x128xbf16>, vector<128x128xbf16>, vector<32x128xf32> -> vector<32x128xf32>
    %c0_56 = arith.constant 0 : index
    %c0_57 = arith.constant 0 : index
    %c0_58 = arith.constant 0 : index
    %109 = vector.load %arg16[%c0_56, %c0_57, %c0_58] : memref<1x1x128xf32, #tpu.memory_space<vmem>>, vector<1x1x128xf32>
    %110 = vector.shape_cast %109 : vector<1x1x128xf32> to vector<1x128xf32>
    %111 = vector.broadcast %110 : vector<1x128xf32> to vector<32x128xf32>
    %112 = arith.addf %108, %111 : vector<32x128xf32>
    %cst_59 = arith.constant 0.00999999977 : f32
    %113 = vector.broadcast %cst_59 : f32 to vector<32x128xf32>
    %114 = arith.mulf %113, %112 : vector<32x128xf32>
    %115 = arith.maximumf %112, %114 : vector<32x128xf32>
    %116 = arith.addf %3, %62 : vector<32x128xf32>
    %117 = arith.addf %116, %115 : vector<32x128xf32>
    %cst_60 = arith.constant dense<0.000000e+00> : vector<32xf32>
    %118 = vector.multi_reduction <add>, %117, %cst_60 [1] : vector<32x128xf32> to vector<32xf32>
    %119 = vector.shape_cast %118 : vector<32xf32> to vector<32x1xf32>
    %cst_61 = arith.constant 3.125000e-02 : f32
    %120 = vector.broadcast %cst_61 : f32 to vector<32x1xf32>
    %121 = arith.mulf %119, %120 : vector<32x1xf32>
    %122 = arith.mulf %117, %117 : vector<32x128xf32>
    %cst_62 = arith.constant dense<0.000000e+00> : vector<32xf32>
    %123 = vector.multi_reduction <add>, %122, %cst_62 [1] : vector<32x128xf32> to vector<32xf32>
    %124 = vector.shape_cast %123 : vector<32xf32> to vector<32x1xf32>
    %cst_63 = arith.constant 3.125000e-02 : f32
    %125 = vector.broadcast %cst_63 : f32 to vector<32x1xf32>
    %126 = arith.mulf %124, %125 : vector<32x1xf32>
    %127 = arith.mulf %121, %121 : vector<32x1xf32>
    %128 = arith.subf %126, %127 : vector<32x1xf32>
    %129 = vector.broadcast %121 : vector<32x1xf32> to vector<32x128xf32>
    %130 = arith.subf %117, %129 : vector<32x128xf32>
    %cst_64 = arith.constant 9.99999974E-6 : f32
    %131 = vector.broadcast %cst_64 : f32 to vector<32x1xf32>
    %132 = arith.addf %128, %131 : vector<32x1xf32>
    %133 = math.rsqrt %132 : vector<32x1xf32>
    %134 = vector.broadcast %133 : vector<32x1xf32> to vector<32x128xf32>
    %135 = arith.mulf %130, %134 : vector<32x128xf32>
    %c0_65 = arith.constant 0 : index
    %c0_66 = arith.constant 0 : index
    %c0_67 = arith.constant 0 : index
    %136 = vector.load %arg17[%c0_65, %c0_66, %c0_67] : memref<1x1x128xf32, #tpu.memory_space<vmem>>, vector<1x1x128xf32>
    %137 = vector.shape_cast %136 : vector<1x1x128xf32> to vector<1x128xf32>
    %138 = vector.broadcast %137 : vector<1x128xf32> to vector<32x128xf32>
    %139 = arith.mulf %135, %138 : vector<32x128xf32>
    %c0_68 = arith.constant 0 : index
    %c0_69 = arith.constant 0 : index
    %c0_70 = arith.constant 0 : index
    %140 = vector.load %arg18[%c0_68, %c0_69, %c0_70] : memref<1x1x128xf32, #tpu.memory_space<vmem>>, vector<1x1x128xf32>
    %141 = vector.shape_cast %140 : vector<1x1x128xf32> to vector<1x128xf32>
    %142 = vector.broadcast %141 : vector<1x128xf32> to vector<32x128xf32>
    %143 = arith.addf %139, %142 : vector<32x128xf32>
    %c0_71 = arith.constant 0 : index
    %c0_72 = arith.constant 0 : index
    %144 = vector.load %arg22[%c0_71, %c0_72] : memref<32x128xf32, #tpu.memory_space<vmem>>, vector<32x128xf32>
    tpu.vector_store %arg22[%c0_71, %c0_72], %143 {strides = array<i32>} : memref<32x128xf32, #tpu.memory_space<vmem>>, vector<32x128xf32>,
    %c1_i32 = arith.constant 1 : i32
    %145 = arith.cmpi eq, %arg0, %c1_i32 : i32
    %146 = arith.extui %145 : i1 to i32
    %c0_i32_73 = arith.constant 0 : i32
    %147 = arith.cmpi ne, %146, %c0_i32_73 : i32
    scf.if %147 {
      %c0_74 = arith.constant 0 : index
      %c0_75 = arith.constant 0 : index
      %148 = vector.load %arg7[%c0_74, %c0_75] : memref<32x1xi32, #tpu.memory_space<vmem>>, vector<32x1xi32>
      %149 = tpu.iota {dimensions = array<i32: 1>} : vector<32x128xi32>
      %150 = vector.broadcast %148 : vector<32x1xi32> to vector<32x128xi32>
      %151 = arith.cmpi eq, %150, %149 : vector<32x128xi32>
      %152 = arith.extui %151 : vector<32x128xi1> to vector<32x128xi32>
      %153 = arith.sitofp %152 : vector<32x128xi32> to vector<32x128xf32>
      %154 = arith.truncf %153 : vector<32x128xf32> to vector<32x128xbf16>
      %155 = arith.truncf %143 : vector<32x128xf32> to vector<32x128xbf16>
      %c0_76 = arith.constant 0 : index
      %c0_77 = arith.constant 0 : index
      %156 = vector.load %arg19[%c0_76, %c0_77] : memref<128x128xbf16, #tpu.memory_space<vmem>>, vector<128x128xbf16>
      %cst_78 = arith.constant dense<0.000000e+00> : vector<32x128xf32>
      %157 = tpu.matmul %155, %156, %cst_78 {dimension_numbers = #tpu.dot_dimension_numbers<[1], [0], [0], [1], [0, 0, 1, 1], [], []>} : vector<32x128xbf16>, vector<128x128xbf16>, vector<32x128xf32> -> vector<32x128xf32>
      %c0_79 = arith.constant 0 : index
      %c0_80 = arith.constant 0 : index
      %158 = vector.load %arg20[%c0_79, %c0_80] : memref<1x128xf32, #tpu.memory_space<vmem>>, vector<1x128xf32>
      %159 = vector.broadcast %158 : vector<1x128xf32> to vector<32x128xf32>
      %160 = arith.addf %157, %159 : vector<32x128xf32>
      %cst_81 = arith.constant 0.00999999977 : f32
      %161 = vector.broadcast %cst_81 : f32 to vector<32x128xf32>
      %162 = arith.mulf %161, %160 : vector<32x128xf32>
      %163 = arith.maximumf %160, %162 : vector<32x128xf32>
      %164 = arith.truncf %163 : vector<32x128xf32> to vector<32x128xbf16>
      %cst_82 = arith.constant dense<0.000000e+00> : vector<128x128xf32>
      %165 = tpu.matmul %154, %164, %cst_82 {dimension_numbers = #tpu.dot_dimension_numbers<[0], [0], [1], [1], [0, 1, 1, 1], [], []>} : vector<32x128xbf16>, vector<32x128xbf16>, vector<128x128xf32> -> vector<128x128xf32>
      %c0_83 = arith.constant 0 : index
      %c0_84 = arith.constant 0 : index
      %166 = vector.load %arg21[%c0_83, %c0_84] : memref<128x128xf32, #tpu.memory_space<vmem>>, vector<128x128xf32>
      tpu.vector_store %arg21[%c0_83, %c0_84], %165 {strides = array<i32>} : memref<128x128xf32, #tpu.memory_space<vmem>>, vector<128x128xf32>,
    } else {
    }
    return
  }
  func.func @transform_0(%arg0: i32) -> (i32, i32) {
    %c0_i32 = arith.constant 0 : i32
    %c0_i32_0 = arith.constant 0 : i32
    %c0_i32_1 = arith.constant 0 : i32
    return %c0_i32, %c0_i32_0 : i32, i32
  }
  func.func @transform_1(%arg0: i32) -> (i32, i32) {
    %c0_i32 = arith.constant 0 : i32
    %c0_i32_0 = arith.constant 0 : i32
    %c0_i32_1 = arith.constant 0 : i32
    return %c0_i32, %c0_i32_0 : i32, i32
  }
  func.func @transform_2(%arg0: i32) -> (i32, i32) {
    %c0_i32 = arith.constant 0 : i32
    %c0_i32_0 = arith.constant 0 : i32
    %c0_i32_1 = arith.constant 0 : i32
    return %c0_i32, %c0_i32_0 : i32, i32
  }
  func.func @transform_3(%arg0: i32) -> (i32, i32) {
    %c0_i32 = arith.constant 0 : i32
    %c0_i32_0 = arith.constant 0 : i32
    %c0_i32_1 = arith.constant 0 : i32
    return %c0_i32, %c0_i32_0 : i32, i32
  }
  func.func @transform_4(%arg0: i32) -> (i32, i32) {
    %c0_i32 = arith.constant 0 : i32
    %c0_i32_0 = arith.constant 0 : i32
    %c0_i32_1 = arith.constant 0 : i32
    return %c0_i32, %c0_i32_0 : i32, i32
  }
  func.func @transform_5(%arg0: i32) -> (i32, i32) {
    %c0_i32 = arith.constant 0 : i32
    %c0_i32_0 = arith.constant 0 : i32
    %c0_i32_1 = arith.constant 0 : i32
    return %c0_i32, %c0_i32_0 : i32, i32
  }
  func.func @transform_6(%arg0: i32) -> (i32, i32) {
    %c0_i32 = arith.constant 0 : i32
    %c0_i32_0 = arith.constant 0 : i32
    %c0_i32_1 = arith.constant 0 : i32
    return %c0_i32, %c0_i32_0 : i32, i32
  }
  func.func @transform_7(%arg0: i32) -> (i32, i32, i32) {
    %c0_i32 = arith.constant 0 : i32
    %c0_i32_0 = arith.constant 0 : i32
    %c0_i32_1 = arith.constant 0 : i32
    return %arg0, %c0_i32, %c0_i32_0 : i32, i32, i32
  }
  func.func @transform_8(%arg0: i32) -> (i32, i32, i32) {
    %c0_i32 = arith.constant 0 : i32
    %c0_i32_0 = arith.constant 0 : i32
    %c0_i32_1 = arith.constant 0 : i32
    return %arg0, %c0_i32, %c0_i32_0 : i32, i32, i32
  }
  func.func @transform_9(%arg0: i32) -> (i32, i32, i32) {
    %c0_i32 = arith.constant 0 : i32
    %c0_i32_0 = arith.constant 0 : i32
    %c0_i32_1 = arith.constant 0 : i32
    return %arg0, %c0_i32, %c0_i32_0 : i32, i32, i32
  }
  func.func @transform_10(%arg0: i32) -> (i32, i32, i32) {
    %c0_i32 = arith.constant 0 : i32
    %c0_i32_0 = arith.constant 0 : i32
    %c0_i32_1 = arith.constant 0 : i32
    return %arg0, %c0_i32, %c0_i32_0 : i32, i32, i32
  }
  func.func @transform_11(%arg0: i32) -> (i32, i32, i32) {
    %c0_i32 = arith.constant 0 : i32
    %c0_i32_0 = arith.constant 0 : i32
    %c0_i32_1 = arith.constant 0 : i32
    return %arg0, %c0_i32, %c0_i32_0 : i32, i32, i32
  }
  func.func @transform_12(%arg0: i32) -> (i32, i32, i32) {
    %c0_i32 = arith.constant 0 : i32
    %c0_i32_0 = arith.constant 0 : i32
    %c0_i32_1 = arith.constant 0 : i32
    return %arg0, %c0_i32, %c0_i32_0 : i32, i32, i32
  }
  func.func @transform_13(%arg0: i32) -> (i32, i32, i32) {
    %c0_i32 = arith.constant 0 : i32
    %c0_i32_0 = arith.constant 0 : i32
    %c0_i32_1 = arith.constant 0 : i32
    return %arg0, %c0_i32, %c0_i32_0 : i32, i32, i32
  }
  func.func @transform_14(%arg0: i32) -> (i32, i32, i32) {
    %c0_i32 = arith.constant 0 : i32
    %c0_i32_0 = arith.constant 0 : i32
    %c0_i32_1 = arith.constant 0 : i32
    return %arg0, %c0_i32, %c0_i32_0 : i32, i32, i32
  }
  func.func @transform_15(%arg0: i32) -> (i32, i32, i32) {
    %c0_i32 = arith.constant 0 : i32
    %c0_i32_0 = arith.constant 0 : i32
    %c0_i32_1 = arith.constant 0 : i32
    return %arg0, %c0_i32, %c0_i32_0 : i32, i32, i32
  }
  func.func @transform_16(%arg0: i32) -> (i32, i32, i32) {
    %c0_i32 = arith.constant 0 : i32
    %c0_i32_0 = arith.constant 0 : i32
    %c0_i32_1 = arith.constant 0 : i32
    return %arg0, %c0_i32, %c0_i32_0 : i32, i32, i32
  }
  func.func @transform_17(%arg0: i32) -> (i32, i32, i32) {
    %c0_i32 = arith.constant 0 : i32
    %c0_i32_0 = arith.constant 0 : i32
    %c0_i32_1 = arith.constant 0 : i32
    return %arg0, %c0_i32, %c0_i32_0 : i32, i32, i32
  }
  func.func @transform_18(%arg0: i32) -> (i32, i32) {
    %c0_i32 = arith.constant 0 : i32
    %c0_i32_0 = arith.constant 0 : i32
    %c0_i32_1 = arith.constant 0 : i32
    return %c0_i32, %c0_i32_0 : i32, i32
  }
  func.func @transform_19(%arg0: i32) -> (i32, i32) {
    %c0_i32 = arith.constant 0 : i32
    %c0_i32_0 = arith.constant 0 : i32
    %c0_i32_1 = arith.constant 0 : i32
    return %c0_i32, %c0_i32_0 : i32, i32
  }
  func.func @transform_20(%arg0: i32) -> (i32, i32) {
    %c0_i32 = arith.constant 0 : i32
    %c0_i32_0 = arith.constant 0 : i32
    %c0_i32_1 = arith.constant 0 : i32
    return %c0_i32, %c0_i32_0 : i32, i32
  }
}

</mosaic_0001>

<llo_original>
// kernel: tpu_custom_call.1
$region0: #{tpu_custom_call.1}
  #allocation0 [shape = 'u32[]', space=smem, size = 0x4, offset = 0x4, fixed_abs, tag = 'smem constant byte address 0x4 - core index']
  #allocation1 [shape = 'u32[72,128]{1,0:T(1,128)}', space=vmem, size = 0x9000, scoped, tag = 'internal scratch']
  #allocation2 [shape = 'f32[32,128]{1,0:T(8,128)}', space=vmem, size = 0x4000, scoped, tag = 'scratch operand']
  %s0 = inlined_call_operand.vmem [shape: f32[32,128], index: 0, kind: input, shape index: {}]
  %s1 = inlined_call_operand.hbm [shape: bf16[64,128], index: 1, kind: input, shape index: {}]
  %s2 = inlined_call_operand.vmem [shape: s32[64,1], index: 2, kind: input, shape index: {}]
  %s3 = inlined_call_operand.vmem [shape: s32[64,1], index: 3, kind: input, shape index: {}]
  %s4 = inlined_call_operand.vmem [shape: s32[32,1], index: 4, kind: input, shape index: {}]
  %s5 = inlined_call_operand.vmem [shape: s32[32,1], index: 5, kind: input, shape index: {}]
  %s6 = inlined_call_operand.vmem [shape: s32[32,1], index: 6, kind: input, shape index: {}]
  %s7 = inlined_call_operand.vmem [shape: bf16[2,128,128], index: 7, kind: input, shape index: {}]
  %s8 = inlined_call_operand.hbm [shape: bf16[2,128,128], index: 8, kind: input, shape index: {}]
  %s9 = inlined_call_operand.vmem [shape: f32[2,1,128], index: 9, kind: input, shape index: {}]
  %s10 = inlined_call_operand.hbm [shape: bf16[2,128,128], index: 10, kind: input, shape index: {}]
  %s11 = inlined_call_operand.vmem [shape: f32[2,1,128], index: 11, kind: input, shape index: {}]
  %s12 = inlined_call_operand.hbm [shape: bf16[2,128,128], index: 12, kind: input, shape index: {}]
  %s13 = inlined_call_operand.hbm [shape: bf16[2,128,128], index: 13, kind: input, shape index: {}]
  %s14 = inlined_call_operand.hbm [shape: bf16[2,128,128], index: 14, kind: input, shape index: {}]
  %s15 = inlined_call_operand.vmem [shape: f32[2,1,128], index: 15, kind: input, shape index: {}]
  %s16 = inlined_call_operand.vmem [shape: f32[2,1,128], index: 16, kind: input, shape index: {}]
  %s17 = inlined_call_operand.vmem [shape: f32[2,1,128], index: 17, kind: input, shape index: {}]
  %s18 = inlined_call_operand.vmem [shape: bf16[128,128], index: 18, kind: input, shape index: {}]
  %s19 = inlined_call_operand.vmem [shape: f32[1,128], index: 19, kind: input, shape index: {}]
  %s20 = inlined_call_operand.hbm [shape: f32[128,128], index: 20, kind: output, shape index: {}]
  %s21 = sld [smem:[#allocation0]]
  $region145: #{tpu_custom_call.1} parent=0
    _
  %s23 = ssub.s32 1, %s21
  %s24 = scalar_select 0, %s23, %s21
  $region1: #{tpu_custom_call.1} parent=0
    #allocation3 [shape = 'u8[16384]{0}', space=vmem, size = 0x4000, scoped, tag = 'input window, operand 1, single buffered']
    #allocation4 [shape = 's32[2]{0}', space=sflag, size = 0x8, scoped, tag = 'scoped memory for tpu_custom_call.1']
    #allocation5 [shape = 's32[2]{0}', space=sflag, size = 0x8, scoped, tag = 'scoped memory for tpu_custom_call.1']
    #allocation6 [shape = 'u8[65536]{0}', space=vmem, size = 0x10000, scoped, tag = 'input window, operand 8']
    #allocation7 [shape = 's32[2]{0}', space=sflag, size = 0x8, scoped, tag = 'scoped memory for tpu_custom_call.1']
    #allocation8 [shape = 'u8[65536]{0}', space=vmem, size = 0x10000, scoped, tag = 'input window, operand 10']
    #allocation9 [shape = 'u8[65536]{0}', space=vmem, size = 0x10000, scoped, tag = 'input window, operand 12']
    #allocation10 [shape = 's32[2]{0}', space=sflag, size = 0x8, scoped, tag = 'scoped memory for tpu_custom_call.1']
    #allocation11 [shape = 'u8[65536]{0}', space=vmem, size = 0x10000, scoped, tag = 'input window, operand 13']
    #allocation12 [shape = 'u8[65536]{0}', space=vmem, size = 0x10000, scoped, tag = 'input window, operand 14']
    #allocation13 [shape = 's32[2]{0}', space=sflag, size = 0x8, scoped, tag = 'scoped memory for tpu_custom_call.1']
    #allocation14 [shape = 'u8[65536]{0}', space=vmem, size = 0x10000, scoped, tag = 'output window, operand 0, single buffered']
    %25 = vsyncpa [#allocation4], 0
    %26 = vsyncpa [#allocation7], 0
    %s27 = scalar_lea.sflag [#allocation7], 1
    %28 = vsyncpa %s27, 0
    %29 = vsyncpa [#allocation10], 0
    %s30 = scalar_lea.sflag [#allocation10], 1
    %31 = vsyncpa %s30, 0
    %32 = vsyncpa [#allocation13], 0
    %s33 = scalar_lea.sflag [#allocation13], 1
    %34 = vsyncpa %s33, 0
    %35 = vsyncpa [#allocation5], 0
    loop: start=0, step=1, limit=4
    $region2: #{tpu_custom_call.1} parent=1 // loop_pre_header
      _
    $region3: #{tpu_custom_call.1} parent=1 // loop_header
      %s37 = sphi 0, %s41
      %p38 = scmp.ge.s32.totalorder %s37, 4
      %s45 = sphi 0, %s45
      %s47 = sphi 0, %s45
      %s48 = sphi 0, %s47
      %s62 = sphi 0, %s48
      %s66 = sphi 0, %s66
      %s68 = sphi 0, %s66
      %s69 = sphi 0, %s68
      %s83 = sphi 0, %s69
      %s87 = sphi 0, %s87
      %s89 = sphi 0, %s87
      %s90 = sphi 0, %s89
      %s104 = sphi 0, %s90
      %s108 = sphi 0, %s108
      %s110 = sphi 0, %s108
      %s111 = sphi 0, %s110
      %s125 = sphi 0, %s111
      %s129 = sphi 0, %s129
      %s131 = sphi 0, %s129
      %s132 = sphi 0, %s131
      %s146 = sphi 0, %s132
      %s150 = sphi 0, %s150
      %s152 = sphi 0, %s150
      %s153 = sphi 0, %s152
      %s167 = sphi 0, %s153
      %s171 = sphi 0, %s171
      %s173 = sphi 0, %s171
      %s174 = sphi 0, %s173
      %s188 = sphi 0, %s174
      %s194 = sphi 0, %s196
      %s197 = sphi 0, %s194
      %s198 = sphi 0, %s197
      %s214 = sphi 0, %s198
      %s220 = sphi 0, %s222
      %s223 = sphi 0, %s220
      %s224 = sphi 0, %s223
      %s240 = sphi 0, %s224
      %s246 = sphi 0, %s248
      %s249 = sphi 0, %s246
      %s250 = sphi 0, %s249
      %s266 = sphi 0, %s250
      %s272 = sphi 0, %s274
      %s275 = sphi 0, %s272
      %s276 = sphi 0, %s275
      %s292 = sphi 0, %s276
      %s298 = sphi 0, %s300
      %s301 = sphi 0, %s298
      %s302 = sphi 0, %s301
      %s318 = sphi 0, %s302
      %s324 = sphi 0, %s326
      %s327 = sphi 0, %s324
      %s328 = sphi 0, %s327
      %s344 = sphi 0, %s328
      %s350 = sphi 0, %s352
      %s353 = sphi 0, %s350
      %s354 = sphi 0, %s353
      %s370 = sphi 0, %s354
      %s376 = sphi 0, %s378
      %s379 = sphi 0, %s376
      %s380 = sphi 0, %s379
      %s396 = sphi 0, %s380
      %s402 = sphi 0, %s404
      %s405 = sphi 0, %s402
      %s406 = sphi 0, %s405
      %s422 = sphi 0, %s406
      %s428 = sphi 0, %s430
      %s431 = sphi 0, %s428
      %s432 = sphi 0, %s431
      %s448 = sphi 0, %s432
      %s454 = sphi 0, %s456
      %s457 = sphi 0, %s454
      %s458 = sphi 0, %s457
      %s474 = sphi 0, %s458
      %s478 = sphi 0, %s478
      %s480 = sphi 0, %s478
      %s481 = sphi 0, %s480
      %s495 = sphi 0, %s481
      %s499 = sphi 0, %s499
      %s501 = sphi 0, %s499
      %s502 = sphi 0, %s501
      %s516 = sphi 0, %s502
      %s520 = sphi 0, %s520
      %s522 = sphi 0, %s520
      %s523 = sphi 0, %s522
      %s537 = sphi 0, %s523
    $region4: #{tpu_custom_call.1} parent=1 // loop_header_branch
      %40 = sbr.rel (%p38) target = $region8
    $region5: #{tpu_custom_call.1} parent=1 // loop_body
      %s42 = ssub.s32 %s37, 1
      %s43 = ssub.s32 %s37, 2
      %s44 = sadd.s32 %s37, 1
      %s46 = sadd.s32 %s45, 1
      %p49 = scmp.eq.s32.totalorder %s37, 1
      %p50 = scmp.ne.s32.totalorder %s45, %s47
      %p51 = scmp.eq.s32.totalorder %s37, 0
      %p52 = por %p50, %p51
      %p53 = scmp.ne.s32.totalorder %s45, %s47
      %p54 = scmp.eq.s32.totalorder %s42, 1
      %p55 = por %p53, %p54
      %p56 = scmp.ne.s32.totalorder %s47, %s48
      %p57 = scmp.eq.s32.totalorder %s42, 0
      %p58 = por %p56, %p57
      %p59 = scmp.ne.s32.totalorder %s47, %s48
      %p60 = scmp.eq.s32.totalorder %s43, 1
      %p61 = por %p59, %p60
      %p63 = scmp.ne.s32.totalorder %s48, %s62
      %p64 = scmp.eq.s32.totalorder %s43, 0
      %p65 = por %p63, %p64
      %s67 = sadd.s32 %s66, 1
      %p70 = scmp.eq.s32.totalorder %s37, 1
      %p71 = scmp.ne.s32.totalorder %s66, %s68
      %p72 = scmp.eq.s32.totalorder %s37, 0
      %p73 = por %p71, %p72
      %p74 = scmp.ne.s32.totalorder %s66, %s68
      %p75 = scmp.eq.s32.totalorder %s42, 1
      %p76 = por %p74, %p75
      %p77 = scmp.ne.s32.totalorder %s68, %s69
      %p78 = scmp.eq.s32.totalorder %s42, 0
      %p79 = por %p77, %p78
      %p80 = scmp.ne.s32.totalorder %s68, %s69
      %p81 = scmp.eq.s32.totalorder %s43, 1
      %p82 = por %p80, %p81
      %p84 = scmp.ne.s32.totalorder %s69, %s83
      %p85 = scmp.eq.s32.totalorder %s43, 0
      %p86 = por %p84, %p85
      %s88 = sadd.s32 %s87, 1
      %p91 = scmp.eq.s32.totalorder %s37, 1
      %p92 = scmp.ne.s32.totalorder %s87, %s89
      %p93 = scmp.eq.s32.totalorder %s37, 0
      %p94 = por %p92, %p93
      %p95 = scmp.ne.s32.totalorder %s87, %s89
      %p96 = scmp.eq.s32.totalorder %s42, 1
      %p97 = por %p95, %p96
      %p98 = scmp.ne.s32.totalorder %s89, %s90
      %p99 = scmp.eq.s32.totalorder %s42, 0
      %p100 = por %p98, %p99
      %p101 = scmp.ne.s32.totalorder %s89, %s90
      %p102 = scmp.eq.s32.totalorder %s43, 1
      %p103 = por %p101, %p102
      %p105 = scmp.ne.s32.totalorder %s90, %s104
      %p106 = scmp.eq.s32.totalorder %s43, 0
      %p107 = por %p105, %p106
      %s109 = sadd.s32 %s108, 1
      %p112 = scmp.eq.s32.totalorder %s37, 1
      %p113 = scmp.ne.s32.totalorder %s108, %s110
      %p114 = scmp.eq.s32.totalorder %s37, 0
      %p115 = por %p113, %p114
      %p116 = scmp.ne.s32.totalorder %s108, %s110
      %p117 = scmp.eq.s32.totalorder %s42, 1
      %p118 = por %p116, %p117
      %p119 = scmp.ne.s32.totalorder %s110, %s111
      %p120 = scmp.eq.s32.totalorder %s42, 0
      %p121 = por %p119, %p120
      %p122 = scmp.ne.s32.totalorder %s110, %s111
      %p123 = scmp.eq.s32.totalorder %s43, 1
      %p124 = por %p122, %p123
      %p126 = scmp.ne.s32.totalorder %s111, %s125
      %p127 = scmp.eq.s32.totalorder %s43, 0
      %p128 = por %p126, %p127
      %s130 = sadd.s32 %s129, 1
      %p133 = scmp.eq.s32.totalorder %s37, 1
      %p134 = scmp.ne.s32.totalorder %s129, %s131
      %p135 = scmp.eq.s32.totalorder %s37, 0
      %p136 = por %p134, %p135
      %p137 = scmp.ne.s32.totalorder %s129, %s131
      %p138 = scmp.eq.s32.totalorder %s42, 1
      %p139 = por %p137, %p138
      %p140 = scmp.ne.s32.totalorder %s131, %s132
      %p141 = scmp.eq.s32.totalorder %s42, 0
      %p142 = por %p140, %p141
      %p143 = scmp.ne.s32.totalorder %s131, %s132
      %p144 = scmp.eq.s32.totalorder %s43, 1
      %p145 = por %p143, %p144
      %p147 = scmp.ne.s32.totalorder %s132, %s146
      %p148 = scmp.eq.s32.totalorder %s43, 0
      %p149 = por %p147, %p148
      %s151 = sadd.s32 %s150, 1
      %p154 = scmp.eq.s32.totalorder %s37, 1
      %p155 = scmp.ne.s32.totalorder %s150, %s152
      %p156 = scmp.eq.s32.totalorder %s37, 0
      %p157 = por %p155, %p156
      %p158 = scmp.ne.s32.totalorder %s150, %s152
      %p159 = scmp.eq.s32.totalorder %s42, 1
      %p160 = por %p158, %p159
      %p161 = scmp.ne.s32.totalorder %s152, %s153
      %p162 = scmp.eq.s32.totalorder %s42, 0
      %p163 = por %p161, %p162
      %p164 = scmp.ne.s32.totalorder %s152, %s153
      %p165 = scmp.eq.s32.totalorder %s43, 1
      %p166 = por %p164, %p165
      %p168 = scmp.ne.s32.totalorder %s153, %s167
      %p169 = scmp.eq.s32.totalorder %s43, 0
      %p170 = por %p168, %p169
      %s172 = sadd.s32 %s171, 1
      %p175 = scmp.eq.s32.totalorder %s37, 1
      %p176 = scmp.ne.s32.totalorder %s171, %s173
      %p177 = scmp.eq.s32.totalorder %s37, 0
      %p178 = por %p176, %p177
      %p179 = scmp.ne.s32.totalorder %s171, %s173
      %p180 = scmp.eq.s32.totalorder %s42, 1
      %p181 = por %p179, %p180
      %p182 = scmp.ne.s32.totalorder %s173, %s174
      %p183 = scmp.eq.s32.totalorder %s42, 0
      %p184 = por %p182, %p183
      %p185 = scmp.ne.s32.totalorder %s173, %s174
      %p186 = scmp.eq.s32.totalorder %s43, 1
      %p187 = por %p185, %p186
      %p189 = scmp.ne.s32.totalorder %s174, %s188
      %p190 = scmp.eq.s32.totalorder %s43, 0
      %p191 = por %p189, %p190
      %s192 = ssub.s32 %s37, %s44
      %p193 = scmp.eq.s32.totalorder %s192, 0
      %s195 = sadd.s32 %s194, 1
      %s196 = scalar_select %p193, %s194, %s195
      %p199 = pneg %p193
      %p200 = scmp.eq.s32.totalorder %s37, 1
      %p201 = por %p199, %p200
      %p202 = scmp.ne.s32.totalorder %s194, %s197
      %p203 = scmp.eq.s32.totalorder %s37, 0
      %p204 = por %p202, %p203
      %p205 = scmp.ne.s32.totalorder %s194, %s197
      %p206 = scmp.eq.s32.totalorder %s42, 1
      %p207 = por %p205, %p206
      %p208 = scmp.ne.s32.totalorder %s197, %s198
      %p209 = scmp.eq.s32.totalorder %s42, 0
      %p210 = por %p208, %p209
      %p211 = scmp.ne.s32.totalorder %s197, %s198
      %p212 = scmp.eq.s32.totalorder %s43, 1
      %p213 = por %p211, %p212
      %p215 = scmp.ne.s32.totalorder %s198, %s214
      %p216 = scmp.eq.s32.totalorder %s43, 0
      %p217 = por %p215, %p216
      %s218 = ssub.s32 %s37, %s44
      %p219 = scmp.eq.s32.totalorder %s218, 0
      %s221 = sadd.s32 %s220, 1
      %s222 = scalar_select %p219, %s220, %s221
      %p225 = pneg %p219
      %p226 = scmp.eq.s32.totalorder %s37, 1
      %p227 = por %p225, %p226
      %p228 = scmp.ne.s32.totalorder %s220, %s223
      %p229 = scmp.eq.s32.totalorder %s37, 0
      %p230 = por %p228, %p229
      %p231 = scmp.ne.s32.totalorder %s220, %s223
      %p232 = scmp.eq.s32.totalorder %s42, 1
      %p233 = por %p231, %p232
      %p234 = scmp.ne.s32.totalorder %s223, %s224
      %p235 = scmp.eq.s32.totalorder %s42, 0
      %p236 = por %p234, %p235
      %p237 = scmp.ne.s32.totalorder %s223, %s224
      %p238 = scmp.eq.s32.totalorder %s43, 1
      %p239 = por %p237, %p238
      %p241 = scmp.ne.s32.totalorder %s224, %s240
      %p242 = scmp.eq.s32.totalorder %s43, 0
      %p243 = por %p241, %p242
      %s244 = ssub.s32 %s37, %s44
      %p245 = scmp.eq.s32.totalorder %s244, 0
      %s247 = sadd.s32 %s246, 1
      %s248 = scalar_select %p245, %s246, %s247
      %p251 = pneg %p245
      %p252 = scmp.eq.s32.totalorder %s37, 1
      %p253 = por %p251, %p252
      %p254 = scmp.ne.s32.totalorder %s246, %s249
      %p255 = scmp.eq.s32.totalorder %s37, 0
      %p256 = por %p254, %p255
      %p257 = scmp.ne.s32.totalorder %s246, %s249
      %p258 = scmp.eq.s32.totalorder %s42, 1
      %p259 = por %p257, %p258
      %p260 = scmp.ne.s32.totalorder %s249, %s250
      %p261 = scmp.eq.s32.totalorder %s42, 0
      %p262 = por %p260, %p261
      %p263 = scmp.ne.s32.totalorder %s249, %s250
      %p264 = scmp.eq.s32.totalorder %s43, 1
      %p265 = por %p263, %p264
      %p267 = scmp.ne.s32.totalorder %s250, %s266
      %p268 = scmp.eq.s32.totalorder %s43, 0
      %p269 = por %p267, %p268
      %s270 = ssub.s32 %s37, %s44
      %p271 = scmp.eq.s32.totalorder %s270, 0
      %s273 = sadd.s32 %s272, 1
      %s274 = scalar_select %p271, %s272, %s273
      %p277 = pneg %p271
      %p278 = scmp.eq.s32.totalorder %s37, 1
      %p279 = por %p277, %p278
      %p280 = scmp.ne.s32.totalorder %s272, %s275
      %p281 = scmp.eq.s32.totalorder %s37, 0
      %p282 = por %p280, %p281
      %p283 = scmp.ne.s32.totalorder %s272, %s275
      %p284 = scmp.eq.s32.totalorder %s42, 1
      %p285 = por %p283, %p284
      %p286 = scmp.ne.s32.totalorder %s275, %s276
      %p287 = scmp.eq.s32.totalorder %s42, 0
      %p288 = por %p286, %p287
      %p289 = scmp.ne.s32.totalorder %s275, %s276
      %p290 = scmp.eq.s32.totalorder %s43, 1
      %p291 = por %p289, %p290
      %p293 = scmp.ne.s32.totalorder %s276, %s292
      %p294 = scmp.eq.s32.totalorder %s43, 0
      %p295 = por %p293, %p294
      %s296 = ssub.s32 %s37, %s44
      %p297 = scmp.eq.s32.totalorder %s296, 0
      %s299 = sadd.s32 %s298, 1
      %s300 = scalar_select %p297, %s298, %s299
      %p303 = pneg %p297
      %p304 = scmp.eq.s32.totalorder %s37, 1
      %p305 = por %p303, %p304
      %p306 = scmp.ne.s32.totalorder %s298, %s301
      %p307 = scmp.eq.s32.totalorder %s37, 0
      %p308 = por %p306, %p307
      %p309 = scmp.ne.s32.totalorder %s298, %s301
      %p310 = scmp.eq.s32.totalorder %s42, 1
      %p311 = por %p309, %p310
      %p312 = scmp.ne.s32.totalorder %s301, %s302
      %p313 = scmp.eq.s32.totalorder %s42, 0
      %p314 = por %p312, %p313
      %p315 = scmp.ne.s32.totalorder %s301, %s302
      %p316 = scmp.eq.s32.totalorder %s43, 1
      %p317 = por %p315, %p316
      %p319 = scmp.ne.s32.totalorder %s302, %s318
      %p320 = scmp.eq.s32.totalorder %s43, 0
      %p321 = por %p319, %p320
      %s322 = ssub.s32 %s37, %s44
      %p323 = scmp.eq.s32.totalorder %s322, 0
      %s325 = sadd.s32 %s324, 1
      %s326 = scalar_select %p323, %s324, %s325
      %p329 = pneg %p323
      %p330 = scmp.eq.s32.totalorder %s37, 1
      %p331 = por %p329, %p330
      %p332 = scmp.ne.s32.totalorder %s324, %s327
      %p333 = scmp.eq.s32.totalorder %s37, 0
      %p334 = por %p332, %p333
      %p335 = scmp.ne.s32.totalorder %s324, %s327
      %p336 = scmp.eq.s32.totalorder %s42, 1
      %p337 = por %p335, %p336
      %p338 = scmp.ne.s32.totalorder %s327, %s328
      %p339 = scmp.eq.s32.totalorder %s42, 0
      %p340 = por %p338, %p339
      %p341 = scmp.ne.s32.totalorder %s327, %s328
      %p342 = scmp.eq.s32.totalorder %s43, 1
      %p343 = por %p341, %p342
      %p345 = scmp.ne.s32.totalorder %s328, %s344
      %p346 = scmp.eq.s32.totalorder %s43, 0
      %p347 = por %p345, %p346
      %s348 = ssub.s32 %s37, %s44
      %p349 = scmp.eq.s32.totalorder %s348, 0
      %s351 = sadd.s32 %s350, 1
      %s352 = scalar_select %p349, %s350, %s351
      %p355 = pneg %p349
      %p356 = scmp.eq.s32.totalorder %s37, 1
      %p357 = por %p355, %p356
      %p358 = scmp.ne.s32.totalorder %s350, %s353
      %p359 = scmp.eq.s32.totalorder %s37, 0
      %p360 = por %p358, %p359
      %p361 = scmp.ne.s32.totalorder %s350, %s353
      %p362 = scmp.eq.s32.totalorder %s42, 1
      %p363 = por %p361, %p362
      %p364 = scmp.ne.s32.totalorder %s353, %s354
      %p365 = scmp.eq.s32.totalorder %s42, 0
      %p366 = por %p364, %p365
      %p367 = scmp.ne.s32.totalorder %s353, %s354
      %p368 = scmp.eq.s32.totalorder %s43, 1
      %p369 = por %p367, %p368
      %p371 = scmp.ne.s32.totalorder %s354, %s370
      %p372 = scmp.eq.s32.totalorder %s43, 0
      %p373 = por %p371, %p372
      %s374 = ssub.s32 %s37, %s44
      %p375 = scmp.eq.s32.totalorder %s374, 0
      %s377 = sadd.s32 %s376, 1
      %s378 = scalar_select %p375, %s376, %s377
      %p381 = pneg %p375
      %p382 = scmp.eq.s32.totalorder %s37, 1
      %p383 = por %p381, %p382
      %p384 = scmp.ne.s32.totalorder %s376, %s379
      %p385 = scmp.eq.s32.totalorder %s37, 0
      %p386 = por %p384, %p385
      %p387 = scmp.ne.s32.totalorder %s376, %s379
      %p388 = scmp.eq.s32.totalorder %s42, 1
      %p389 = por %p387, %p388
      %p390 = scmp.ne.s32.totalorder %s379, %s380
      %p391 = scmp.eq.s32.totalorder %s42, 0
      %p392 = por %p390, %p391
      %p393 = scmp.ne.s32.totalorder %s379, %s380
      %p394 = scmp.eq.s32.totalorder %s43, 1
      %p395 = por %p393, %p394
      %p397 = scmp.ne.s32.totalorder %s380, %s396
      %p398 = scmp.eq.s32.totalorder %s43, 0
      %p399 = por %p397, %p398
      %s400 = ssub.s32 %s37, %s44
      %p401 = scmp.eq.s32.totalorder %s400, 0
      %s403 = sadd.s32 %s402, 1
      %s404 = scalar_select %p401, %s402, %s403
      %p407 = pneg %p401
      %p408 = scmp.eq.s32.totalorder %s37, 1
      %p409 = por %p407, %p408
      %p410 = scmp.ne.s32.totalorder %s402, %s405
      %p411 = scmp.eq.s32.totalorder %s37, 0
      %p412 = por %p410, %p411
      %p413 = scmp.ne.s32.totalorder %s402, %s405
      %p414 = scmp.eq.s32.totalorder %s42, 1
      %p415 = por %p413, %p414
      %p416 = scmp.ne.s32.totalorder %s405, %s406
      %p417 = scmp.eq.s32.totalorder %s42, 0
      %p418 = por %p416, %p417
      %p419 = scmp.ne.s32.totalorder %s405, %s406
      %p420 = scmp.eq.s32.totalorder %s43, 1
      %p421 = por %p419, %p420
      %p423 = scmp.ne.s32.totalorder %s406, %s422
      %p424 = scmp.eq.s32.totalorder %s43, 0
      %p425 = por %p423, %p424
      %s426 = ssub.s32 %s37, %s44
      %p427 = scmp.eq.s32.totalorder %s426, 0
      %s429 = sadd.s32 %s428, 1
      %s430 = scalar_select %p427, %s428, %s429
      %p433 = pneg %p427
      %p434 = scmp.eq.s32.totalorder %s37, 1
      %p435 = por %p433, %p434
      %p436 = scmp.ne.s32.totalorder %s428, %s431
      %p437 = scmp.eq.s32.totalorder %s37, 0
      %p438 = por %p436, %p437
      %p439 = scmp.ne.s32.totalorder %s428, %s431
      %p440 = scmp.eq.s32.totalorder %s42, 1
      %p441 = por %p439, %p440
      %p442 = scmp.ne.s32.totalorder %s431, %s432
      %p443 = scmp.eq.s32.totalorder %s42, 0
      %p444 = por %p442, %p443
      %p445 = scmp.ne.s32.totalorder %s431, %s432
      %p446 = scmp.eq.s32.totalorder %s43, 1
      %p447 = por %p445, %p446
      %p449 = scmp.ne.s32.totalorder %s432, %s448
      %p450 = scmp.eq.s32.totalorder %s43, 0
      %p451 = por %p449, %p450
      %s452 = ssub.s32 %s37, %s44
      %p453 = scmp.eq.s32.totalorder %s452, 0
      %s455 = sadd.s32 %s454, 1
      %s456 = scalar_select %p453, %s454, %s455
      %p459 = pneg %p453
      %p460 = scmp.eq.s32.totalorder %s37, 1
      %p461 = por %p459, %p460
      %p462 = scmp.ne.s32.totalorder %s454, %s457
      %p463 = scmp.eq.s32.totalorder %s37, 0
      %p464 = por %p462, %p463
      %p465 = scmp.ne.s32.totalorder %s454, %s457
      %p466 = scmp.eq.s32.totalorder %s42, 1
      %p467 = por %p465, %p466
      %p468 = scmp.ne.s32.totalorder %s457, %s458
      %p469 = scmp.eq.s32.totalorder %s42, 0
      %p470 = por %p468, %p469
      %p471 = scmp.ne.s32.totalorder %s457, %s458
      %p472 = scmp.eq.s32.totalorder %s43, 1
      %p473 = por %p471, %p472
      %p475 = scmp.ne.s32.totalorder %s458, %s474
      %p476 = scmp.eq.s32.totalorder %s43, 0
      %p477 = por %p475, %p476
      %s479 = sadd.s32 %s478, 1
      %p482 = scmp.eq.s32.totalorder %s37, 1
      %p483 = scmp.ne.s32.totalorder %s478, %s480
      %p484 = scmp.eq.s32.totalorder %s37, 0
      %p485 = por %p483, %p484
      %p486 = scmp.ne.s32.totalorder %s478, %s480
      %p487 = scmp.eq.s32.totalorder %s42, 1
      %p488 = por %p486, %p487
      %p489 = scmp.ne.s32.totalorder %s480, %s481
      %p490 = scmp.eq.s32.totalorder %s42, 0
      %p491 = por %p489, %p490
      %p492 = scmp.ne.s32.totalorder %s480, %s481
      %p493 = scmp.eq.s32.totalorder %s43, 1
      %p494 = por %p492, %p493
      %p496 = scmp.ne.s32.totalorder %s481, %s495
      %p497 = scmp.eq.s32.totalorder %s43, 0
      %p498 = por %p496, %p497
      %s500 = sadd.s32 %s499, 1
      %p503 = scmp.eq.s32.totalorder %s37, 1
      %p504 = scmp.ne.s32.totalorder %s499, %s501
      %p505 = scmp.eq.s32.totalorder %s37, 0
      %p506 = por %p504, %p505
      %p507 = scmp.ne.s32.totalorder %s499, %s501
      %p508 = scmp.eq.s32.totalorder %s42, 1
      %p509 = por %p507, %p508
      %p510 = scmp.ne.s32.totalorder %s501, %s502
      %p511 = scmp.eq.s32.totalorder %s42, 0
      %p512 = por %p510, %p511
      %p513 = scmp.ne.s32.totalorder %s501, %s502
      %p514 = scmp.eq.s32.totalorder %s43, 1
      %p515 = por %p513, %p514
      %p517 = scmp.ne.s32.totalorder %s502, %s516
      %p518 = scmp.eq.s32.totalorder %s43, 0
      %p519 = por %p517, %p518
      %s521 = sadd.s32 %s520, 1
      %p524 = scmp.eq.s32.totalorder %s37, 1
      %p525 = scmp.ne.s32.totalorder %s520, %s522
      %p526 = scmp.eq.s32.totalorder %s37, 0
      %p527 = por %p525, %p526
      %p528 = scmp.ne.s32.totalorder %s520, %s522
      %p529 = scmp.eq.s32.totalorder %s42, 1
      %p530 = por %p528, %p529
      %p531 = scmp.ne.s32.totalorder %s522, %s523
      %p532 = scmp.eq.s32.totalorder %s42, 0
      %p533 = por %p531, %p532
      %p534 = scmp.ne.s32.totalorder %s522, %s523
      %p535 = scmp.eq.s32.totalorder %s43, 1
      %p536 = por %p534, %p535
      %p538 = scmp.ne.s32.totalorder %s523, %s537
      %p539 = scmp.eq.s32.totalorder %s43, 0
      %p540 = por %p538, %p539
      %p541 = scmp.le.s32.totalorder 1, %s37
      %p542 = scmp.lt.s32.totalorder %s37, 3
      %p543 = pnand %p541, %p542
      %p544 = pneg %p543
      // Predicated region
      $region9: #{tpu_custom_call.1} parent=5 // pred_check
        _
      $region10: #{tpu_custom_call.1} parent=5 // pred_check_branch
        %546 = sbr.rel (%p543) target = $region12
      $region11: #{tpu_custom_call.1} parent=5 // pred_region
        %s547 = ssub.s32 %s37, 1
        // Predicated region
        $region13: #{tpu_custom_call.1} parent=11 // pred_check
          %p548 = pneg %p58
        $region14: #{tpu_custom_call.1} parent=11 // pred_check_branch
          %550 = sbr.rel (%p548) target = $region16
        $region15: #{tpu_custom_call.1} parent=11 // pred_region
          _
        $region16: #{tpu_custom_call.1} parent=11 // pred_fallthru
          _
        // Predicated region
        $region17: #{tpu_custom_call.1} parent=11 // pred_check
          %p551 = pneg %p79
        $region18: #{tpu_custom_call.1} parent=11 // pred_check_branch
          %553 = sbr.rel (%p551) target = $region20
        $region19: #{tpu_custom_call.1} parent=11 // pred_region
          %555 = vsyncadd [#allocation4], 0
          %s556 = sshll.u32 %s1, 4
          %s557 = int_to_ptr.hbm [resolvable:$true] %s556
          %s558 = sshll.u32 [#allocation3], 4
          %s559 = int_to_ptr.vmem [resolvable:$true] %s558
          %564 = dma.hbm_to_vmem [thread:$0]  %s557, 512, %s559, [#allocation4], 64, 64, 4
        $region20: #{tpu_custom_call.1} parent=11 // pred_fallthru
          _
        // Predicated region
        $region21: #{tpu_custom_call.1} parent=11 // pred_check
          %p565 = pneg %p100
        $region22: #{tpu_custom_call.1} parent=11 // pred_check_branch
          %567 = sbr.rel (%p565) target = $region24
        $region23: #{tpu_custom_call.1} parent=11 // pred_region
          _
        $region24: #{tpu_custom_call.1} parent=11 // pred_fallthru
          _
        // Predicated region
        $region25: #{tpu_custom_call.1} parent=11 // pred_check
          %p568 = pneg %p121
        $region26: #{tpu_custom_call.1} parent=11 // pred_check_branch
          %570 = sbr.rel (%p568) target = $region28
        $region27: #{tpu_custom_call.1} parent=11 // pred_region
          _
        $region28: #{tpu_custom_call.1} parent=11 // pred_fallthru
          _
        // Predicated region
        $region29: #{tpu_custom_call.1} parent=11 // pred_check
          %p571 = pneg %p142
        $region30: #{tpu_custom_call.1} parent=11 // pred_check_branch
          %573 = sbr.rel (%p571) target = $region32
        $region31: #{tpu_custom_call.1} parent=11 // pred_region
          _
        $region32: #{tpu_custom_call.1} parent=11 // pred_fallthru
          _
        // Predicated region
        $region33: #{tpu_custom_call.1} parent=11 // pred_check
          %p574 = pneg %p163
        $region34: #{tpu_custom_call.1} parent=11 // pred_check_branch
          %576 = sbr.rel (%p574) target = $region36
        $region35: #{tpu_custom_call.1} parent=11 // pred_region
          _
        $region36: #{tpu_custom_call.1} parent=11 // pred_fallthru
          _
        // Predicated region
        $region37: #{tpu_custom_call.1} parent=11 // pred_check
          %p577 = pneg %p184
        $region38: #{tpu_custom_call.1} parent=11 // pred_check_branch
          %579 = sbr.rel (%p577) target = $region40
        $region39: #{tpu_custom_call.1} parent=11 // pred_region
          _
        $region40: #{tpu_custom_call.1} parent=11 // pred_fallthru
          _
        // Predicated region
        $region41: #{tpu_custom_call.1} parent=11 // pred_check
          %p580 = pneg %p491
        $region42: #{tpu_custom_call.1} parent=11 // pred_check_branch
          %582 = sbr.rel (%p580) target = $region44
        $region43: #{tpu_custom_call.1} parent=11 // pred_region
          _
        $region44: #{tpu_custom_call.1} parent=11 // pred_fallthru
          _
        // Predicated region
        $region45: #{tpu_custom_call.1} parent=11 // pred_check
          %p583 = pneg %p512
        $region46: #{tpu_custom_call.1} parent=11 // pred_check_branch
          %585 = sbr.rel (%p583) target = $region48
        $region47: #{tpu_custom_call.1} parent=11 // pred_region
          _
        $region48: #{tpu_custom_call.1} parent=11 // pred_fallthru
          _
      $region12: #{tpu_custom_call.1} parent=5 // pred_fallthru
        _
      %p586 = scmp.lt.s32.totalorder %s37, 2
      // Predicated region
      $region49: #{tpu_custom_call.1} parent=5 // pred_check
        %p587 = pneg %p586
      $region50: #{tpu_custom_call.1} parent=5 // pred_check_branch
        %589 = sbr.rel (%p587) target = $region52
      $region51: #{tpu_custom_call.1} parent=5 // pred_region
        // Predicated region
        $region53: #{tpu_custom_call.1} parent=51 // pred_check
          %p590 = pneg %p204
        $region54: #{tpu_custom_call.1} parent=51 // pred_check_branch
          %592 = sbr.rel (%p590) target = $region56
        $region55: #{tpu_custom_call.1} parent=51 // pred_region
          %p593 = scmp.lt.s32.totalorder %s37, 1
          %s594 = scalar_select %p593, %s37, 1
          %s595 = smul.addr %s594, 16
          %s596 = smul.addr %s595, 4
          %s597 = scalar_lea.vmem %s7, %s596
        $region56: #{tpu_custom_call.1} parent=51 // pred_fallthru
          _
        // Predicated region
        $region57: #{tpu_custom_call.1} parent=51 // pred_check
          %p598 = pneg %p230
        $region58: #{tpu_custom_call.1} parent=51 // pred_check_branch
          %600 = sbr.rel (%p598) target = $region60
        $region59: #{tpu_custom_call.1} parent=51 // pred_region
          %s601 = sand.u32 %s37, 1
          %s602 = scalar_lea.sflag [#allocation7], %s601
          %s603 = sand.u32 %s220, 1
          %s604 = smul.addr %s603, 64
          %s605 = scalar_lea.vmem [#allocation6], %s604
          %607 = vsyncadd %s602, 0
          %s608 = smul.addr %s37, 16
          %s609 = smul.addr %s608, 4
          %s610 = scalar_lea.hbm %s8, %s609
          %s611 = sshll.u32 %s610, 4
          %s612 = int_to_ptr.hbm [resolvable:$true] %s611
          %s613 = sshll.u32 %s605, 4
          %s614 = int_to_ptr.vmem [resolvable:$true] %s613
          %619 = dma.hbm_to_vmem [thread:$0]  %s612, 1024, %s614, %s602, 64, 64, 4
        $region60: #{tpu_custom_call.1} parent=51 // pred_fallthru
          _
        // Predicated region
        $region61: #{tpu_custom_call.1} parent=51 // pred_check
          %p620 = pneg %p256
        $region62: #{tpu_custom_call.1} parent=51 // pred_check_branch
          %622 = sbr.rel (%p620) target = $region64
        $region63: #{tpu_custom_call.1} parent=51 // pred_region
          %p623 = scmp.lt.s32.totalorder %s37, 1
          %s624 = scalar_select %p623, %s37, 1
          %s625 = scalar_lea.vmem %s9, %s624
        $region64: #{tpu_custom_call.1} parent=51 // pred_fallthru
          _
        // Predicated region
        $region65: #{tpu_custom_call.1} parent=51 // pred_check
          %p626 = pneg %p282
        $region66: #{tpu_custom_call.1} parent=51 // pred_check_branch
          %628 = sbr.rel (%p626) target = $region68
        $region67: #{tpu_custom_call.1} parent=51 // pred_region
          %s629 = sand.u32 %s37, 1
          %s630 = scalar_lea.sflag [#allocation7], %s629
          %s631 = sand.u32 %s272, 1
          %s632 = smul.addr %s631, 64
          %s633 = scalar_lea.vmem [#allocation8], %s632
          %635 = vsyncadd %s630, 0
          %s636 = smul.addr %s37, 16
          %s637 = smul.addr %s636, 4
          %s638 = scalar_lea.hbm %s10, %s637
          %s639 = sshll.u32 %s638, 4
          %s640 = int_to_ptr.hbm [resolvable:$true] %s639
          %s641 = sshll.u32 %s633, 4
          %s642 = int_to_ptr.vmem [resolvable:$true] %s641
          %647 = dma.hbm_to_vmem [thread:$0]  %s640, 1024, %s642, %s630, 64, 64, 4
        $region68: #{tpu_custom_call.1} parent=51 // pred_fallthru
          _
        // Predicated region
        $region69: #{tpu_custom_call.1} parent=51 // pred_check
          %p648 = pneg %p308
        $region70: #{tpu_custom_call.1} parent=51 // pred_check_branch
          %650 = sbr.rel (%p648) target = $region72
        $region71: #{tpu_custom_call.1} parent=51 // pred_region
          %p651 = scmp.lt.s32.totalorder %s37, 1
          %s652 = scalar_select %p651, %s37, 1
          %s653 = scalar_lea.vmem %s11, %s652
        $region72: #{tpu_custom_call.1} parent=51 // pred_fallthru
          _
        // Predicated region
        $region73: #{tpu_custom_call.1} parent=51 // pred_check
          %p654 = pneg %p334
        $region74: #{tpu_custom_call.1} parent=51 // pred_check_branch
          %656 = sbr.rel (%p654) target = $region76
        $region75: #{tpu_custom_call.1} parent=51 // pred_region
          %s657 = sand.u32 %s37, 1
          %s658 = scalar_lea.sflag [#allocation10], %s657
          %s659 = sand.u32 %s324, 1
          %s660 = smul.addr %s659, 64
          %s661 = scalar_lea.vmem [#allocation9], %s660
          %663 = vsyncadd %s658, 0
          %s664 = smul.addr %s37, 16
          %s665 = smul.addr %s664, 4
          %s666 = scalar_lea.hbm %s12, %s665
          %s667 = sshll.u32 %s666, 4
          %s668 = int_to_ptr.hbm [resolvable:$true] %s667
          %s669 = sshll.u32 %s661, 4
          %s670 = int_to_ptr.vmem [resolvable:$true] %s669
          %675 = dma.hbm_to_vmem [thread:$0]  %s668, 1024, %s670, %s658, 64, 64, 4
        $region76: #{tpu_custom_call.1} parent=51 // pred_fallthru
          _
        // Predicated region
        $region77: #{tpu_custom_call.1} parent=51 // pred_check
          %p676 = pneg %p360
        $region78: #{tpu_custom_call.1} parent=51 // pred_check_branch
          %678 = sbr.rel (%p676) target = $region80
        $region79: #{tpu_custom_call.1} parent=51 // pred_region
          %s679 = sand.u32 %s37, 1
          %s680 = scalar_lea.sflag [#allocation10], %s679
          %s681 = sand.u32 %s350, 1
          %s682 = smul.addr %s681, 64
          %s683 = scalar_lea.vmem [#allocation11], %s682
          %685 = vsyncadd %s680, 0
          %s686 = smul.addr %s37, 16
          %s687 = smul.addr %s686, 4
          %s688 = scalar_lea.hbm %s13, %s687
          %s689 = sshll.u32 %s688, 4
          %s690 = int_to_ptr.hbm [resolvable:$true] %s689
          %s691 = sshll.u32 %s683, 4
          %s692 = int_to_ptr.vmem [resolvable:$true] %s691
          %697 = dma.hbm_to_vmem [thread:$0]  %s690, 1024, %s692, %s680, 64, 64, 4
        $region80: #{tpu_custom_call.1} parent=51 // pred_fallthru
          _
        // Predicated region
        $region81: #{tpu_custom_call.1} parent=51 // pred_check
          %p698 = pneg %p386
        $region82: #{tpu_custom_call.1} parent=51 // pred_check_branch
          %700 = sbr.rel (%p698) target = $region84
        $region83: #{tpu_custom_call.1} parent=51 // pred_region
          %s701 = sand.u32 %s376, 1
          %s702 = scalar_lea.sflag [#allocation13], %s701
          %s703 = sand.u32 %s376, 1
          %s704 = smul.addr %s703, 64
          %s705 = scalar_lea.vmem [#allocation12], %s704
          %707 = vsyncadd %s702, 0
          %s708 = smul.addr %s37, 16
          %s709 = smul.addr %s708, 4
          %s710 = scalar_lea.hbm %s14, %s709
          %s711 = sshll.u32 %s710, 4
          %s712 = int_to_ptr.hbm [resolvable:$true] %s711
          %s713 = sshll.u32 %s705, 4
          %s714 = int_to_ptr.vmem [resolvable:$true] %s713
          %719 = dma.hbm_to_vmem [thread:$0]  %s712, 1024, %s714, %s702, 64, 64, 4
        $region84: #{tpu_custom_call.1} parent=51 // pred_fallthru
          _
        // Predicated region
        $region85: #{tpu_custom_call.1} parent=51 // pred_check
          %p720 = pneg %p412
        $region86: #{tpu_custom_call.1} parent=51 // pred_check_branch
          %722 = sbr.rel (%p720) target = $region88
        $region87: #{tpu_custom_call.1} parent=51 // pred_region
          %p723 = scmp.lt.s32.totalorder %s37, 1
          %s724 = scalar_select %p723, %s37, 1
          %s725 = scalar_lea.vmem %s15, %s724
        $region88: #{tpu_custom_call.1} parent=51 // pred_fallthru
          _
        // Predicated region
        $region89: #{tpu_custom_call.1} parent=51 // pred_check
          %p726 = pneg %p438
        $region90: #{tpu_custom_call.1} parent=51 // pred_check_branch
          %728 = sbr.rel (%p726) target = $region92
        $region91: #{tpu_custom_call.1} parent=51 // pred_region
          %p729 = scmp.lt.s32.totalorder %s37, 1
          %s730 = scalar_select %p729, %s37, 1
          %s731 = scalar_lea.vmem %s16, %s730
        $region92: #{tpu_custom_call.1} parent=51 // pred_fallthru
          _
        // Predicated region
        $region93: #{tpu_custom_call.1} parent=51 // pred_check
          %p732 = pneg %p464
        $region94: #{tpu_custom_call.1} parent=51 // pred_check_branch
          %734 = sbr.rel (%p732) target = $region96
        $region95: #{tpu_custom_call.1} parent=51 // pred_region
          %p735 = scmp.lt.s32.totalorder %s37, 1
          %s736 = scalar_select %p735, %s37, 1
          %s737 = scalar_lea.vmem %s17, %s736
        $region96: #{tpu_custom_call.1} parent=51 // pred_fallthru
          _
      $region52: #{tpu_custom_call.1} parent=5 // pred_fallthru
        _
      %p738 = scmp.le.s32.totalorder 1, %s37
      %p739 = scmp.lt.s32.totalorder %s37, 3
      %p740 = pnand %p738, %p739
      %p741 = pneg %p740
      // Predicated region
      $region97: #{tpu_custom_call.1} parent=5 // pred_check
        _
      $region98: #{tpu_custom_call.1} parent=5 // pred_check_branch
        %743 = sbr.rel (%p740) target = $region100
      $region99: #{tpu_custom_call.1} parent=5 // pred_region
        %s744 = ssub.s32 %s37, 1
        // Predicated region
        $region101: #{tpu_custom_call.1} parent=99 // pred_check
          %p745 = pneg %p79
        $region102: #{tpu_custom_call.1} parent=99 // pred_check_branch
          %747 = sbr.rel (%p745) target = $region104
        $region103: #{tpu_custom_call.1} parent=99 // pred_region
          %749 = dma.done [#allocation4], 512
        $region104: #{tpu_custom_call.1} parent=99 // pred_fallthru
          _
        %s750 = sand.u32 %s42, 1
        %s751 = scalar_lea.sflag [#allocation7], %s750
        %s752 = sand.u32 %s223, 1
        %s753 = smul.addr %s752, 64
        %s754 = scalar_lea.vmem [#allocation6], %s753
        // Predicated region
        $region105: #{tpu_custom_call.1} parent=99 // pred_check
          %p755 = pneg %p236
        $region106: #{tpu_custom_call.1} parent=99 // pred_check_branch
          %757 = sbr.rel (%p755) target = $region108
        $region107: #{tpu_custom_call.1} parent=99 // pred_region
          %759 = dma.done %s751, 1024
        $region108: #{tpu_custom_call.1} parent=99 // pred_fallthru
          _
        %s760 = sand.u32 %s42, 1
        %s761 = scalar_lea.sflag [#allocation7], %s760
        %s762 = sand.u32 %s275, 1
        %s763 = smul.addr %s762, 64
        %s764 = scalar_lea.vmem [#allocation8], %s763
        // Predicated region
        $region109: #{tpu_custom_call.1} parent=99 // pred_check
          %p765 = pneg %p288
        $region110: #{tpu_custom_call.1} parent=99 // pred_check_branch
          %767 = sbr.rel (%p765) target = $region112
        $region111: #{tpu_custom_call.1} parent=99 // pred_region
          %769 = dma.done %s761, 1024
        $region112: #{tpu_custom_call.1} parent=99 // pred_fallthru
          _
        %s770 = sand.u32 %s42, 1
        %s771 = scalar_lea.sflag [#allocation10], %s770
        %s772 = sand.u32 %s327, 1
        %s773 = smul.addr %s772, 64
        %s774 = scalar_lea.vmem [#allocation9], %s773
        // Predicated region
        $region113: #{tpu_custom_call.1} parent=99 // pred_check
          %p775 = pneg %p340
        $region114: #{tpu_custom_call.1} parent=99 // pred_check_branch
          %777 = sbr.rel (%p775) target = $region116
        $region115: #{tpu_custom_call.1} parent=99 // pred_region
          %779 = dma.done %s771, 1024
        $region116: #{tpu_custom_call.1} parent=99 // pred_fallthru
          _
        %s780 = sand.u32 %s42, 1
        %s781 = scalar_lea.sflag [#allocation10], %s780
        %s782 = sand.u32 %s353, 1
        %s783 = smul.addr %s782, 64
        %s784 = scalar_lea.vmem [#allocation11], %s783
        // Predicated region
        $region117: #{tpu_custom_call.1} parent=99 // pred_check
          %p785 = pneg %p366
        $region118: #{tpu_custom_call.1} parent=99 // pred_check_branch
          %787 = sbr.rel (%p785) target = $region120
        $region119: #{tpu_custom_call.1} parent=99 // pred_region
          %789 = dma.done %s781, 1024
        $region120: #{tpu_custom_call.1} parent=99 // pred_fallthru
          _
        %s790 = sand.u32 %s379, 1
        %s791 = scalar_lea.sflag [#allocation13], %s790
        %s792 = sand.u32 %s379, 1
        %s793 = smul.addr %s792, 64
        %s794 = scalar_lea.vmem [#allocation12], %s793
        // Predicated region
        $region121: #{tpu_custom_call.1} parent=99 // pred_check
          %p795 = pneg %p392
        $region122: #{tpu_custom_call.1} parent=99 // pred_check_branch
          %797 = sbr.rel (%p795) target = $region124
        $region123: #{tpu_custom_call.1} parent=99 // pred_region
          %799 = dma.done %s791, 1024
        $region124: #{tpu_custom_call.1} parent=99 // pred_fallthru
          _
        %p800 = pneg %p58
        %p801 = pneg %p55
        %p802 = pneg %p79
        %p803 = pneg %p76
        %p804 = pneg %p100
        %p805 = pneg %p97
        %p806 = pneg %p121
        %p807 = pneg %p118
        %p808 = pneg %p142
        %p809 = pneg %p139
        %p810 = pneg %p163
        %p811 = pneg %p160
        %p812 = pneg %p184
        %p813 = pneg %p181
        %p814 = scmp.lt.s32.totalorder %s42, 1
        %s815 = scalar_select %p814, %s42, 1
        %s816 = smul.addr %s815, 16
        %s817 = smul.addr %s816, 4
        %s818 = scalar_lea.vmem %s7, %s817
        %p819 = pneg %p210
        %p820 = pneg %p207
        %s821 = sand.u32 %s42, 1
        %s822 = scalar_lea.sflag [#allocation7], %s821
        %s823 = sand.u32 %s223, 1
        %s824 = smul.addr %s823, 64
        %s825 = scalar_lea.vmem [#allocation6], %s824
        %p826 = pneg %p236
        %p827 = pneg %p233
        %p828 = scmp.lt.s32.totalorder %s42, 1
        %s829 = scalar_select %p828, %s42, 1
        %s830 = scalar_lea.vmem %s9, %s829
        %p831 = pneg %p262
        %p832 = pneg %p259
        %s833 = sand.u32 %s42, 1
        %s834 = scalar_lea.sflag [#allocation7], %s833
        %s835 = sand.u32 %s275, 1
        %s836 = smul.addr %s835, 64
        %s837 = scalar_lea.vmem [#allocation8], %s836
        %p838 = pneg %p288
        %p839 = pneg %p285
        %p840 = scmp.lt.s32.totalorder %s42, 1
        %s841 = scalar_select %p840, %s42, 1
        %s842 = scalar_lea.vmem %s11, %s841
        %p843 = pneg %p314
        %p844 = pneg %p311
        %s845 = sand.u32 %s42, 1
        %s846 = scalar_lea.sflag [#allocation10], %s845
        %s847 = sand.u32 %s327, 1
        %s848 = smul.addr %s847, 64
        %s849 = scalar_lea.vmem [#allocation9], %s848
        %p850 = pneg %p340
        %p851 = pneg %p337
        %s852 = sand.u32 %s42, 1
        %s853 = scalar_lea.sflag [#allocation10], %s852
        %s854 = sand.u32 %s353, 1
        %s855 = smul.addr %s854, 64
        %s856 = scalar_lea.vmem [#allocation11], %s855
        %p857 = pneg %p366
        %p858 = pneg %p363
        %s859 = sand.u32 %s379, 1
        %s860 = scalar_lea.sflag [#allocation13], %s859
        %s861 = sand.u32 %s379, 1
        %s862 = smul.addr %s861, 64
        %s863 = scalar_lea.vmem [#allocation12], %s862
        %p864 = pneg %p392
        %p865 = pneg %p389
        %p866 = scmp.lt.s32.totalorder %s42, 1
        %s867 = scalar_select %p866, %s42, 1
        %s868 = scalar_lea.vmem %s15, %s867
        %p869 = pneg %p418
        %p870 = pneg %p415
        %p871 = scmp.lt.s32.totalorder %s42, 1
        %s872 = scalar_select %p871, %s42, 1
        %s873 = scalar_lea.vmem %s16, %s872
        %p874 = pneg %p444
        %p875 = pneg %p441
        %p876 = scmp.lt.s32.totalorder %s42, 1
        %s877 = scalar_select %p876, %s42, 1
        %s878 = scalar_lea.vmem %s17, %s877
        %p879 = pneg %p470
        %p880 = pneg %p467
        %p881 = pneg %p491
        %p882 = pneg %p488
        %p883 = pneg %p512
        %p884 = pneg %p509
        %p885 = pneg %p533
        %p886 = pneg %p530
        %p887 = scmp.lt.s32.totalorder %s42, 1
        %s888 = scalar_select %p887, %s42, 1
        %s889 = smul.addr %s888, 16
        %s890 = smul.addr %s889, 4
        %s891 = scalar_lea.vmem %s7, %s890
        %p892 = scmp.lt.s32.totalorder %s42, 1
        %s893 = scalar_select %p892, %s42, 1
        %s894 = scalar_lea.vmem %s9, %s893
        %p895 = scmp.lt.s32.totalorder %s42, 1
        %s896 = scalar_select %p895, %s42, 1
        %s897 = scalar_lea.vmem %s11, %s896
        %p898 = scmp.lt.s32.totalorder %s42, 1
        %s899 = scalar_select %p898, %s42, 1
        %s900 = scalar_lea.vmem %s15, %s899
        %p901 = scmp.lt.s32.totalorder %s42, 1
        %s902 = scalar_select %p901, %s42, 1
        %s903 = scalar_lea.vmem %s16, %s902
        %p904 = scmp.lt.s32.totalorder %s42, 1
        %s905 = scalar_select %p904, %s42, 1
        %s906 = scalar_lea.vmem %s17, %s905
        %p908 = scmp.eq.s32.totalorder %s42, 0
        // Predicated region
        $region125: #{tpu_custom_call.1} parent=99 // pred_check
          %p909 = pneg %p908
        $region126: #{tpu_custom_call.1} parent=99 // pred_check_branch
          %911 = sbr.rel (%p909) target = $region128
        $region127: #{tpu_custom_call.1} parent=99 // pred_region
          %v912 = vld [vmem:[%s0] sm:$0xff]
          %v913 = vld [vmem:[%s0 + $0x8] sm:$0xff]
          %v914 = vld [vmem:[%s0 + $0x10] sm:$0xff]
          %v915 = vld [vmem:[%s0 + $0x18] sm:$0xff]
          %916 = vst [vmem:[#allocation2] sm:$0xff] %v912
          %917 = vst [vmem:[#allocation2 + $0x8] sm:$0xff] %v913
          %918 = vst [vmem:[#allocation2 + $0x10] sm:$0xff] %v914
          %919 = vst [vmem:[#allocation2 + $0x18] sm:$0xff] %v915
        $region128: #{tpu_custom_call.1} parent=99 // pred_fallthru
          _
        %v920 = vld [vmem:[#allocation2] sm:$0xff]
        %v921 = vld [vmem:[#allocation2 + $0x8] sm:$0xff]
        %v922 = vld [vmem:[#allocation2 + $0x10] sm:$0xff]
        %v923 = vld [vmem:[#allocation2 + $0x18] sm:$0xff]
        %v924 = vpack.c.bf16 %v921, %v920
        %v925 = vpack.c.bf16 %v923, %v922
        %v926 = vld [vmem:[%s2] sm:$0xff]
        %v927 = vld [vmem:[%s2 + $0x8] sm:$0xff]
        %v928 = vld [vmem:[%s2 + $0x10] sm:$0xff]
        %v929 = vld [vmem:[%s2 + $0x18] sm:$0xff]
        %v930 = vld [vmem:[%s2 + $0x20] sm:$0xff]
        %v931 = vld [vmem:[%s2 + $0x28] sm:$0xff]
        %v932 = vld [vmem:[%s2 + $0x30] sm:$0xff]
        %v933 = vld [vmem:[%s2 + $0x38] sm:$0xff]
        %v934 = vlaneseq
        %v935 = vand.u32 %v934, 127
        %936 = vset.pattern.permute.xlu0 0
        %937 = vperm.xlu0 %936, %v926
        %v938 = vpop.permute.xlu0 %937
        %939 = vset.pattern.permute.xlu0 0
        %940 = vperm.xlu0 %939, %v927
        %v941 = vpop.permute.xlu0 %940
        %942 = vset.pattern.permute.xlu0 0
        %943 = vperm.xlu0 %942, %v928
        %v944 = vpop.permute.xlu0 %943
        %945 = vset.pattern.permute.xlu0 0
        %946 = vperm.xlu0 %945, %v929
        %v947 = vpop.permute.xlu0 %946
        %948 = vset.pattern.permute.xlu0 0
        %949 = vperm.xlu0 %948, %v930
        %v950 = vpop.permute.xlu0 %949
        %951 = vset.pattern.permute.xlu0 0
        %952 = vperm.xlu0 %951, %v931
        %v953 = vpop.permute.xlu0 %952
        %954 = vset.pattern.permute.xlu0 0
        %955 = vperm.xlu0 %954, %v932
        %v956 = vpop.permute.xlu0 %955
        %957 = vset.pattern.permute.xlu0 0
        %958 = vperm.xlu0 %957, %v933
        %v959 = vpop.permute.xlu0 %958
        %vm960 = vcmp.eq.s32.totalorder %v938, %v935
        %vm961 = vcmp.eq.s32.totalorder %v941, %v935
        %vm962 = vcmp.eq.s32.totalorder %v944, %v935
        %vm963 = vcmp.eq.s32.totalorder %v947, %v935
        %vm964 = vcmp.eq.s32.totalorder %v950, %v935
        %vm965 = vcmp.eq.s32.totalorder %v953, %v935
        %vm966 = vcmp.eq.s32.totalorder %v956, %v935
        %vm967 = vcmp.eq.s32.totalorder %v959, %v935
        %v968 = vsel %vm960, 1, 0
        %v969 = vsel %vm961, 1, 0
        %v970 = vsel %vm962, 1, 0
        %v971 = vsel %vm963, 1, 0
        %v972 = vsel %vm964, 1, 0
        %v973 = vsel %vm965, 1, 0
        %v974 = vsel %vm966, 1, 0
        %v975 = vsel %vm967, 1, 0
        %v976 = vcvt.s32.f32 %v968
        %v977 = vcvt.s32.f32 %v969
        %v978 = vcvt.s32.f32 %v970
        %v979 = vcvt.s32.f32 %v971
        %v980 = vcvt.s32.f32 %v972
        %v981 = vcvt.s32.f32 %v973
        %v982 = vcvt.s32.f32 %v974
        %v983 = vcvt.s32.f32 %v975
        %v984 = vpack.c.bf16 %v977, %v976
        %v985 = vpack.c.bf16 %v979, %v978
        %v986 = vpack.c.bf16 %v981, %v980
        %v987 = vpack.c.bf16 %v983, %v982
        %v988 = vld [vmem:[%s3] sm:$0xff]
        %v989 = vld [vmem:[%s3 + $0x8] sm:$0xff]
        %v990 = vld [vmem:[%s3 + $0x10] sm:$0xff]
        %v991 = vld [vmem:[%s3 + $0x18] sm:$0xff]
        %v992 = vld [vmem:[%s3 + $0x20] sm:$0xff]
        %v993 = vld [vmem:[%s3 + $0x28] sm:$0xff]
        %v994 = vld [vmem:[%s3 + $0x30] sm:$0xff]
        %v995 = vld [vmem:[%s3 + $0x38] sm:$0xff]
        %996 = vset.pattern.permute.xlu0 0
        %997 = vperm.xlu0 %996, %v988
        %v998 = vpop.permute.xlu0 %997
        %999 = vset.pattern.permute.xlu0 0
        %1000 = vperm.xlu0 %999, %v989
        %v1001 = vpop.permute.xlu0 %1000
        %1002 = vset.pattern.permute.xlu0 0
        %1003 = vperm.xlu0 %1002, %v990
        %v1004 = vpop.permute.xlu0 %1003
        %1005 = vset.pattern.permute.xlu0 0
        %1006 = vperm.xlu0 %1005, %v991
        %v1007 = vpop.permute.xlu0 %1006
        %1008 = vset.pattern.permute.xlu0 0
        %1009 = vperm.xlu0 %1008, %v992
        %v1010 = vpop.permute.xlu0 %1009
        %1011 = vset.pattern.permute.xlu0 0
        %1012 = vperm.xlu0 %1011, %v993
        %v1013 = vpop.permute.xlu0 %1012
        %1014 = vset.pattern.permute.xlu0 0
        %1015 = vperm.xlu0 %1014, %v994
        %v1016 = vpop.permute.xlu0 %1015
        %1017 = vset.pattern.permute.xlu0 0
        %1018 = vperm.xlu0 %1017, %v995
        %v1019 = vpop.permute.xlu0 %1018
        %vm1020 = vcmp.eq.s32.totalorder %v998, %v935
        %vm1021 = vcmp.eq.s32.totalorder %v1001, %v935
        %vm1022 = vcmp.eq.s32.totalorder %v1004, %v935
        %vm1023 = vcmp.eq.s32.totalorder %v1007, %v935
        %vm1024 = vcmp.eq.s32.totalorder %v1010, %v935
        %vm1025 = vcmp.eq.s32.totalorder %v1013, %v935
        %vm1026 = vcmp.eq.s32.totalorder %v1016, %v935
        %vm1027 = vcmp.eq.s32.totalorder %v1019, %v935
        %v1028 = vsel %vm1020, 1, 0
        %v1029 = vsel %vm1021, 1, 0
        %v1030 = vsel %vm1022, 1, 0
        %v1031 = vsel %vm1023, 1, 0
        %v1032 = vsel %vm1024, 1, 0
        %v1033 = vsel %vm1025, 1, 0
        %v1034 = vsel %vm1026, 1, 0
        %v1035 = vsel %vm1027, 1, 0
        %v1036 = vcvt.s32.f32 %v1028
        %v1037 = vcvt.s32.f32 %v1029
        %v1038 = vcvt.s32.f32 %v1030
        %v1039 = vcvt.s32.f32 %v1031
        %v1040 = vcvt.s32.f32 %v1032
        %v1041 = vcvt.s32.f32 %v1033
        %v1042 = vcvt.s32.f32 %v1034
        %v1043 = vcvt.s32.f32 %v1035
        %v1044 = vpack.c.bf16 %v1037, %v1036
        %v1045 = vpack.c.bf16 %v1039, %v1038
        %v1046 = vpack.c.bf16 %v1041, %v1040
        %v1047 = vpack.c.bf16 %v1043, %v1042
        %v1048 = vld [vmem:[%s4] sm:$0xff]
        %v1049 = vld [vmem:[%s4 + $0x8] sm:$0xff]
        %v1050 = vld [vmem:[%s4 + $0x10] sm:$0xff]
        %v1051 = vld [vmem:[%s4 + $0x18] sm:$0xff]
        %1052 = vset.pattern.permute.xlu0 0
        %1053 = vperm.xlu0 %1052, %v1048
        %v1054 = vpop.permute.xlu0 %1053
        %1055 = vset.pattern.permute.xlu0 0
        %1056 = vperm.xlu0 %1055, %v1049
        %v1057 = vpop.permute.xlu0 %1056
        %1058 = vset.pattern.permute.xlu0 0
        %1059 = vperm.xlu0 %1058, %v1050
        %v1060 = vpop.permute.xlu0 %1059
        %1061 = vset.pattern.permute.xlu0 0
        %1062 = vperm.xlu0 %1061, %v1051
        %v1063 = vpop.permute.xlu0 %1062
        %vm1064 = vcmp.eq.s32.totalorder %v1054, %v935
        %vm1065 = vcmp.eq.s32.totalorder %v1057, %v935
        %vm1066 = vcmp.eq.s32.totalorder %v1060, %v935
        %vm1067 = vcmp.eq.s32.totalorder %v1063, %v935
        %v1068 = vsel %vm1064, 1, 0
        %v1069 = vsel %vm1065, 1, 0
        %v1070 = vsel %vm1066, 1, 0
        %v1071 = vsel %vm1067, 1, 0
        %v1072 = vcvt.s32.f32 %v1068
        %v1073 = vcvt.s32.f32 %v1069
        %v1074 = vcvt.s32.f32 %v1070
        %v1075 = vcvt.s32.f32 %v1071
        %v1076 = vpack.c.bf16 %v1073, %v1072
        %v1077 = vpack.c.bf16 %v1075, %v1074
        %v1078 = vld [vmem:[%s5] sm:$0xff]
        %v1079 = vld [vmem:[%s5 + $0x8] sm:$0xff]
        %v1080 = vld [vmem:[%s5 + $0x10] sm:$0xff]
        %v1081 = vld [vmem:[%s5 + $0x18] sm:$0xff]
        %1082 = vset.pattern.permute.xlu0 0
        %1083 = vperm.xlu0 %1082, %v1078
        %v1084 = vpop.permute.xlu0 %1083
        %1085 = vset.pattern.permute.xlu0 0
        %1086 = vperm.xlu0 %1085, %v1079
        %v1087 = vpop.permute.xlu0 %1086
        %1088 = vset.pattern.permute.xlu0 0
        %1089 = vperm.xlu0 %1088, %v1080
        %v1090 = vpop.permute.xlu0 %1089
        %1091 = vset.pattern.permute.xlu0 0
        %1092 = vperm.xlu0 %1091, %v1081
        %v1093 = vpop.permute.xlu0 %1092
        %vm1094 = vcmp.eq.s32.totalorder %v1084, %v935
        %vm1095 = vcmp.eq.s32.totalorder %v1087, %v935
        %vm1096 = vcmp.eq.s32.totalorder %v1090, %v935
        %vm1097 = vcmp.eq.s32.totalorder %v1093, %v935
        %v1098 = vsel %vm1094, 1, 0
        %v1099 = vsel %vm1095, 1, 0
        %v1100 = vsel %vm1096, 1, 0
        %v1101 = vsel %vm1097, 1, 0
        %v1102 = vcvt.s32.f32 %v1098
        %v1103 = vcvt.s32.f32 %v1099
        %v1104 = vcvt.s32.f32 %v1100
        %v1105 = vcvt.s32.f32 %v1101
        %v1106 = vpack.c.bf16 %v1103, %v1102
        %v1107 = vpack.c.bf16 %v1105, %v1104
        %v1108 = vld [vmem:[#allocation3] sm:$0xf]
        %v1109 = vld [vmem:[#allocation3 + $0x4] sm:$0xf]
        %v1110 = vld [vmem:[#allocation3 + $0x8] sm:$0xf]
        %v1111 = vld [vmem:[#allocation3 + $0xc] sm:$0xf]
        %v1112 = vld [vmem:[#allocation3 + $0x10] sm:$0xf]
        %v1113 = vld [vmem:[#allocation3 + $0x14] sm:$0xf]
        %v1114 = vld [vmem:[#allocation3 + $0x18] sm:$0xf]
        %v1115 = vld [vmem:[#allocation3 + $0x1c] sm:$0xf]
        %v1116 = vld [vmem:[%s754] sm:$0xf]
        %v1117 = vld [vmem:[%s754 + $0x4] sm:$0xf]
        %v1118 = vld [vmem:[%s754 + $0x8] sm:$0xf]
        %v1119 = vld [vmem:[%s754 + $0xc] sm:$0xf]
        %v1120 = vld [vmem:[%s754 + $0x10] sm:$0xf]
        %v1121 = vld [vmem:[%s754 + $0x14] sm:$0xf]
        %v1122 = vld [vmem:[%s754 + $0x18] sm:$0xf]
        %v1123 = vld [vmem:[%s754 + $0x1c] sm:$0xf]
        %v1124 = vld [vmem:[%s754 + $0x20] sm:$0xf]
        %v1125 = vld [vmem:[%s754 + $0x24] sm:$0xf]
        %v1126 = vld [vmem:[%s754 + $0x28] sm:$0xf]
        %v1127 = vld [vmem:[%s754 + $0x2c] sm:$0xf]
        %v1128 = vld [vmem:[%s754 + $0x30] sm:$0xf]
        %v1129 = vld [vmem:[%s754 + $0x34] sm:$0xf]
        %v1130 = vld [vmem:[%s754 + $0x38] sm:$0xf]
        %v1131 = vld [vmem:[%s754 + $0x3c] sm:$0xf]
        %v1132 = vld [vmem:[%s894] sm:$0x1]
        %v1134 = vperm.slane %v1132, 0
        %v1144 = vunpack.c.l.b16 %v1108
        %v1145 = vunpack.c.l.b16 %v1109
        %v1146 = vunpack.c.l.b16 %v1110
        %v1147 = vunpack.c.l.b16 %v1111
        %v1148 = vunpack.c.l.b16 %v1112
        %v1149 = vunpack.c.l.b16 %v1113
        %v1150 = vunpack.c.l.b16 %v1114
        %v1151 = vunpack.c.l.b16 %v1115
        %v1152 = vpack.c.b16 %v1145, %v1144
        %v1153 = vpack.c.b16 %v1147, %v1146
        %v1154 = vpack.c.b16 %v1149, %v1148
        %v1155 = vpack.c.b16 %v1151, %v1150
        %v1176 = vunpack.c.l.b16 %v1116
        %v1177 = vunpack.c.l.b16 %v1117
        %v1178 = vunpack.c.l.b16 %v1118
        %v1179 = vunpack.c.l.b16 %v1119
        %v1180 = vunpack.c.l.b16 %v1120
        %v1181 = vunpack.c.l.b16 %v1121
        %v1182 = vunpack.c.l.b16 %v1122
        %v1183 = vunpack.c.l.b16 %v1123
        %v1184 = vunpack.c.l.b16 %v1124
        %v1185 = vunpack.c.l.b16 %v1125
        %v1186 = vunpack.c.l.b16 %v1126
        %v1187 = vunpack.c.l.b16 %v1127
        %v1188 = vunpack.c.l.b16 %v1128
        %v1189 = vunpack.c.l.b16 %v1129
        %v1190 = vunpack.c.l.b16 %v1130
        %v1191 = vunpack.c.l.b16 %v1131
        %v1192 = vpack.c.b16 %v1177, %v1176
        %v1193 = vpack.c.b16 %v1179, %v1178
        %v1194 = vpack.c.b16 %v1181, %v1180
        %v1195 = vpack.c.b16 %v1183, %v1182
        %v1196 = vpack.c.b16 %v1185, %v1184
        %v1197 = vpack.c.b16 %v1187, %v1186
        %v1198 = vpack.c.b16 %v1189, %v1188
        %v1199 = vpack.c.b16 %v1191, %v1190
        %1208 = vmatpush.bf16.msra.mxu0 %v1199
        %1209 = vmatpush.bf16.msra.mxu0 %v1198
        %1210 = vmatpush.bf16.msra.mxu0 %v1197
        %1211 = vmatpush.bf16.msra.mxu0 %v1196
        %1212 = vmatpush.bf16.msra.mxu0 %v1195
        %1213 = vmatpush.bf16.msra.mxu0 %v1194
        %1214 = vmatpush.bf16.msra.mxu0 %v1193
        %1215 = vmatpush.bf16.msra.mxu0 %v1192
        %1216 = vmatmul.bf16.gmra.mxu0 %v1152
        %v1217 = vpop.f32.mrf.mxu0
        %v1218 = vadd.f32 %v1134, %v1217
        %v1219 = vpop.f32.mrf.mxu0
        %v1220 = vadd.f32 %v1134, %v1219
        %1221 = vmatmul.bf16.gmra.mxu0 %v1153
        %v1222 = vpop.f32.mrf.mxu0
        %v1223 = vadd.f32 %v1134, %v1222
        %v1224 = vpop.f32.mrf.mxu0
        %v1225 = vadd.f32 %v1134, %v1224
        %1226 = vmatmul.bf16.gmra.mxu0 %v1154
        %v1227 = vpop.f32.mrf.mxu0
        %v1228 = vadd.f32 %v1134, %v1227
        %v1229 = vpop.f32.mrf.mxu0
        %v1230 = vadd.f32 %v1134, %v1229
        %1231 = vmatmul.bf16.gmra.mxu0 %v1155
        %v1232 = vpop.f32.mrf.mxu0
        %v1233 = vadd.f32 %v1134, %v1232
        %v1234 = vpop.f32.mrf.mxu0
        %v1235 = vadd.f32 %v1134, %v1234
        %1236 = vdwg.mxu0
        %v1237 = vmul.f32 %v1218, 0.01
        %v1238 = vmul.f32 %v1220, 0.01
        %v1239 = vmul.f32 %v1223, 0.01
        %v1240 = vmul.f32 %v1225, 0.01
        %v1241 = vmul.f32 %v1228, 0.01
        %v1242 = vmul.f32 %v1230, 0.01
        %v1243 = vmul.f32 %v1233, 0.01
        %v1244 = vmul.f32 %v1235, 0.01
        %v1245 = vmax.f32 %v1218, %v1237
        %v1246 = vmax.f32 %v1220, %v1238
        %v1247 = vmax.f32 %v1223, %v1239
        %v1248 = vmax.f32 %v1225, %v1240
        %v1249 = vmax.f32 %v1228, %v1241
        %v1250 = vmax.f32 %v1230, %v1242
        %v1251 = vmax.f32 %v1233, %v1243
        %v1252 = vmax.f32 %v1235, %v1244
        %v1253 = vpack.c.bf16 %v1246, %v1245
        %v1254 = vpack.c.bf16 %v1248, %v1247
        %v1255 = vpack.c.bf16 %v1250, %v1249
        %v1256 = vpack.c.bf16 %v1252, %v1251
        %v1257 = vld [vmem:[%s764] sm:$0xf]
        %v1258 = vld [vmem:[%s764 + $0x4] sm:$0xf]
        %v1259 = vld [vmem:[%s764 + $0x8] sm:$0xf]
        %v1260 = vld [vmem:[%s764 + $0xc] sm:$0xf]
        %v1261 = vld [vmem:[%s764 + $0x10] sm:$0xf]
        %v1262 = vld [vmem:[%s764 + $0x14] sm:$0xf]
        %v1263 = vld [vmem:[%s764 + $0x18] sm:$0xf]
        %v1264 = vld [vmem:[%s764 + $0x1c] sm:$0xf]
        %v1265 = vld [vmem:[%s764 + $0x20] sm:$0xf]
        %v1266 = vld [vmem:[%s764 + $0x24] sm:$0xf]
        %v1267 = vld [vmem:[%s764 + $0x28] sm:$0xf]
        %v1268 = vld [vmem:[%s764 + $0x2c] sm:$0xf]
        %v1269 = vld [vmem:[%s764 + $0x30] sm:$0xf]
        %v1270 = vld [vmem:[%s764 + $0x34] sm:$0xf]
        %v1271 = vld [vmem:[%s764 + $0x38] sm:$0xf]
        %v1272 = vld [vmem:[%s764 + $0x3c] sm:$0xf]
        %v1273 = vld [vmem:[%s897] sm:$0x1]
        %v1275 = vperm.slane %v1273, 0
        %v1293 = vunpack.c.l.b16 %v1257
        %v1294 = vunpack.c.l.b16 %v1258
        %v1295 = vunpack.c.l.b16 %v1259
        %v1296 = vunpack.c.l.b16 %v1260
        %v1297 = vunpack.c.l.b16 %v1261
        %v1298 = vunpack.c.l.b16 %v1262
        %v1299 = vunpack.c.l.b16 %v1263
        %v1300 = vunpack.c.l.b16 %v1264
        %v1301 = vunpack.c.l.b16 %v1265
        %v1302 = vunpack.c.l.b16 %v1266
        %v1303 = vunpack.c.l.b16 %v1267
        %v1304 = vunpack.c.l.b16 %v1268
        %v1305 = vunpack.c.l.b16 %v1269
        %v1306 = vunpack.c.l.b16 %v1270
        %v1307 = vunpack.c.l.b16 %v1271
        %v1308 = vunpack.c.l.b16 %v1272
        %v1309 = vpack.c.b16 %v1294, %v1293
        %v1310 = vpack.c.b16 %v1296, %v1295
        %v1311 = vpack.c.b16 %v1298, %v1297
        %v1312 = vpack.c.b16 %v1300, %v1299
        %v1313 = vpack.c.b16 %v1302, %v1301
        %v1314 = vpack.c.b16 %v1304, %v1303
        %v1315 = vpack.c.b16 %v1306, %v1305
        %v1316 = vpack.c.b16 %v1308, %v1307
        %1325 = vmatpush.bf16.msra.mxu0 %v1316
        %1326 = vmatpush.bf16.msra.mxu0 %v1315
        %1327 = vmatpush.bf16.msra.mxu0 %v1314
        %1328 = vmatpush.bf16.msra.mxu0 %v1313
        %1329 = vmatpush.bf16.msra.mxu0 %v1312
        %1330 = vmatpush.bf16.msra.mxu0 %v1311
        %1331 = vmatpush.bf16.msra.mxu0 %v1310
        %1332 = vmatpush.bf16.msra.mxu0 %v1309
        %1333 = vmatmul.bf16.gmra.mxu0 %v1253
        %v1334 = vpop.f32.mrf.mxu0
        %v1335 = vadd.f32 %v1275, %v1334
        %v1336 = vpop.f32.mrf.mxu0
        %v1337 = vadd.f32 %v1275, %v1336
        %1338 = vmatmul.bf16.gmra.mxu0 %v1254
        %v1339 = vpop.f32.mrf.mxu0
        %v1340 = vadd.f32 %v1275, %v1339
        %v1341 = vpop.f32.mrf.mxu0
        %v1342 = vadd.f32 %v1275, %v1341
        %1343 = vmatmul.bf16.gmra.mxu0 %v1255
        %v1344 = vpop.f32.mrf.mxu0
        %v1345 = vadd.f32 %v1275, %v1344
        %v1346 = vpop.f32.mrf.mxu0
        %v1347 = vadd.f32 %v1275, %v1346
        %1348 = vmatmul.bf16.gmra.mxu0 %v1256
        %v1349 = vpop.f32.mrf.mxu0
        %v1350 = vadd.f32 %v1275, %v1349
        %v1351 = vpop.f32.mrf.mxu0
        %v1352 = vadd.f32 %v1275, %v1351
        %1353 = vdwg.mxu0
        %v1354 = vmul.f32 %v1335, 0.01
        %v1355 = vmul.f32 %v1337, 0.01
        %v1356 = vmul.f32 %v1340, 0.01
        %v1357 = vmul.f32 %v1342, 0.01
        %v1358 = vmul.f32 %v1345, 0.01
        %v1359 = vmul.f32 %v1347, 0.01
        %v1360 = vmul.f32 %v1350, 0.01
        %v1361 = vmul.f32 %v1352, 0.01
        %v1362 = vmax.f32 %v1335, %v1354
        %v1363 = vmax.f32 %v1337, %v1355
        %v1364 = vmax.f32 %v1340, %v1356
        %v1365 = vmax.f32 %v1342, %v1357
        %v1366 = vmax.f32 %v1345, %v1358
        %v1367 = vmax.f32 %v1347, %v1359
        %v1368 = vmax.f32 %v1350, %v1360
        %v1369 = vmax.f32 %v1352, %v1361
        %v1370 = vld [vmem:[%s891] sm:$0xf]
        %v1371 = vld [vmem:[%s891 + $0x4] sm:$0xf]
        %v1372 = vld [vmem:[%s891 + $0x8] sm:$0xf]
        %v1373 = vld [vmem:[%s891 + $0xc] sm:$0xf]
        %v1374 = vld [vmem:[%s891 + $0x10] sm:$0xf]
        %v1375 = vld [vmem:[%s891 + $0x14] sm:$0xf]
        %v1376 = vld [vmem:[%s891 + $0x18] sm:$0xf]
        %v1377 = vld [vmem:[%s891 + $0x1c] sm:$0xf]
        %v1378 = vld [vmem:[%s891 + $0x20] sm:$0xf]
        %v1379 = vld [vmem:[%s891 + $0x24] sm:$0xf]
        %v1380 = vld [vmem:[%s891 + $0x28] sm:$0xf]
        %v1381 = vld [vmem:[%s891 + $0x2c] sm:$0xf]
        %v1382 = vld [vmem:[%s891 + $0x30] sm:$0xf]
        %v1383 = vld [vmem:[%s891 + $0x34] sm:$0xf]
        %v1384 = vld [vmem:[%s891 + $0x38] sm:$0xf]
        %v1385 = vld [vmem:[%s891 + $0x3c] sm:$0xf]
        %v1402 = vunpack.c.l.b16 %v1370
        %v1403 = vunpack.c.l.b16 %v1371
        %v1404 = vunpack.c.l.b16 %v1372
        %v1405 = vunpack.c.l.b16 %v1373
        %v1406 = vunpack.c.l.b16 %v1374
        %v1407 = vunpack.c.l.b16 %v1375
        %v1408 = vunpack.c.l.b16 %v1376
        %v1409 = vunpack.c.l.b16 %v1377
        %v1410 = vunpack.c.l.b16 %v1378
        %v1411 = vunpack.c.l.b16 %v1379
        %v1412 = vunpack.c.l.b16 %v1380
        %v1413 = vunpack.c.l.b16 %v1381
        %v1414 = vunpack.c.l.b16 %v1382
        %v1415 = vunpack.c.l.b16 %v1383
        %v1416 = vunpack.c.l.b16 %v1384
        %v1417 = vunpack.c.l.b16 %v1385
        %v1418 = vpack.c.b16 %v1403, %v1402
        %v1419 = vpack.c.b16 %v1405, %v1404
        %v1420 = vpack.c.b16 %v1407, %v1406
        %v1421 = vpack.c.b16 %v1409, %v1408
        %v1422 = vpack.c.b16 %v1411, %v1410
        %v1423 = vpack.c.b16 %v1413, %v1412
        %v1424 = vpack.c.b16 %v1415, %v1414
        %v1425 = vpack.c.b16 %v1417, %v1416
        %1434 = vmatpush.bf16.msra.mxu0 %v1425
        %1435 = vmatpush.bf16.msra.mxu0 %v1424
        %1436 = vmatpush.bf16.msra.mxu0 %v1423
        %1437 = vmatpush.bf16.msra.mxu0 %v1422
        %1438 = vmatpush.bf16.msra.mxu0 %v1421
        %1439 = vmatpush.bf16.msra.mxu0 %v1420
        %1440 = vmatpush.bf16.msra.mxu0 %v1419
        %1441 = vmatpush.bf16.msra.mxu0 %v1418
        %1442 = vmatmul.bf16.gmra.mxu0 %v924
        %v1443 = vpop.f32.mrf.mxu0
        %v1444 = vadd.f32 0.0, %v1443
        %v1445 = vpop.f32.mrf.mxu0
        %v1446 = vadd.f32 0.0, %v1445
        %1447 = vmatmul.bf16.gmra.mxu0 %v925
        %v1448 = vpop.f32.mrf.mxu0
        %v1449 = vadd.f32 0.0, %v1448
        %v1450 = vpop.f32.mrf.mxu0
        %v1451 = vadd.f32 0.0, %v1450
        %1452 = vdwg.mxu0
        %v1453 = vpack.c.bf16 %v1446, %v1444
        %v1454 = vpack.c.bf16 %v1451, %v1449
        %vm1455 = vcmask 261120
        %v1457 = vsel %vm1455, %v1044, 0
        %v1460 = vsel %vm1455, %v1045, 0
        %v1463 = vsel %vm1455, %v1046, 0
        %v1466 = vsel %vm1455, %v1047, 0
        %1468 = vmatpush.bf16.msra.mxu0 0
        %1469 = vmatpush.bf16.msra.mxu0 0
        %1470 = vmatpush.bf16.msra.mxu0 0
        %1471 = vmatpush.bf16.msra.mxu0 0
        %1472 = vmatpush.bf16.msra.mxu0 0
        %1473 = vmatpush.bf16.msra.mxu0 0
        %1474 = vmatpush.bf16.msra.mxu0 %v1454
        %1475 = vmatpush.bf16.msra.mxu0 %v1453
        %1476 = vmatmul.bf16.gmra.mxu0 %v1457
        %v1477 = vpop.f32.mrf.mxu0
        %v1478 = vadd.f32 0.0, %v1477
        %v1479 = vpop.f32.mrf.mxu0
        %v1480 = vadd.f32 0.0, %v1479
        %1481 = vmatmul.bf16.gmra.mxu0 %v1460
        %v1482 = vpop.f32.mrf.mxu0
        %v1483 = vadd.f32 0.0, %v1482
        %v1484 = vpop.f32.mrf.mxu0
        %v1485 = vadd.f32 0.0, %v1484
        %1486 = vmatmul.bf16.gmra.mxu0 %v1463
        %v1487 = vpop.f32.mrf.mxu0
        %v1488 = vadd.f32 0.0, %v1487
        %v1489 = vpop.f32.mrf.mxu0
        %v1490 = vadd.f32 0.0, %v1489
        %1491 = vmatmul.bf16.gmra.mxu0 %v1466
        %v1492 = vpop.f32.mrf.mxu0
        %v1493 = vadd.f32 0.0, %v1492
        %v1494 = vpop.f32.mrf.mxu0
        %v1495 = vadd.f32 0.0, %v1494
        %1496 = vdwg.mxu0
        %v1497 = vmul.f32 %v1478, %v1362
        %v1498 = vmul.f32 %v1480, %v1363
        %v1499 = vmul.f32 %v1483, %v1364
        %v1500 = vmul.f32 %v1485, %v1365
        %v1501 = vmul.f32 %v1488, %v1366
        %v1502 = vmul.f32 %v1490, %v1367
        %v1503 = vmul.f32 %v1493, %v1368
        %v1504 = vmul.f32 %v1495, %v1369
        %v1505 = vpack.c.bf16 %v1498, %v1497
        %v1506 = vpack.c.bf16 %v1500, %v1499
        %v1507 = vpack.c.bf16 %v1502, %v1501
        %v1508 = vpack.c.bf16 %v1504, %v1503
        %1509 = vxpose.xlu0.c.b16.start [1/8] %v984, 128
        %1510 = vxpose.xlu0.c.b16.cont [2/8] %v985, 128
        %1511 = vxpose.xlu0.c.b16.cont [3/8] %v986, 128
        %1512 = vxpose.xlu0.c.b16.cont [4/8] %v987, 128
        %1513 = vxpose.xlu0.c.b16.cont [5/8] 0, 128
        %1514 = vxpose.xlu0.c.b16.cont [6/8] 0, 128
        %1515 = vxpose.xlu0.c.b16.cont [7/8] 0, 128
        %1516 = vxpose.xlu0.c.b16.end [8/8] 0, 128
        %v1517 = vpop.trf.xlu0
        %v1518 = vpop.trf.xlu0
        %v1519 = vpop.trf.xlu0
        %v1520 = vpop.trf.xlu0
        %v1521 = vpop.trf.xlu0
        %v1522 = vpop.trf.xlu0
        %v1523 = vpop.trf.xlu0
        %v1524 = vpop.trf.xlu0
        %vm1525 = vcmask 523264
        %v1527 = vsel %vm1525, %v1517, 0
        %v1530 = vsel %vm1525, %v1518, 0
        %1532 = vmatpush.bf16.msra.mxu0 0
        %1533 = vmatpush.bf16.msra.mxu0 0
        %1534 = vmatpush.bf16.msra.mxu0 0
        %1535 = vmatpush.bf16.msra.mxu0 0
        %1536 = vmatpush.bf16.msra.mxu0 %v1508
        %1537 = vmatpush.bf16.msra.mxu0 %v1507
        %1538 = vmatpush.bf16.msra.mxu0 %v1506
        %1539 = vmatpush.bf16.msra.mxu0 %v1505
        %1540 = vmatmul.bf16.gmra.mxu0 %v1527
        %v1541 = vpop.f32.mrf.mxu0
        %v1542 = vadd.f32 0.0, %v1541
        %v1543 = vpop.f32.mrf.mxu0
        %v1544 = vadd.f32 0.0, %v1543
        %1545 = vmatmul.bf16.gmra.mxu0 %v1530
        %v1546 = vpop.f32.mrf.mxu0
        %v1547 = vadd.f32 0.0, %v1546
        %v1548 = vpop.f32.mrf.mxu0
        %v1549 = vadd.f32 0.0, %v1548
        %1550 = vdwg.mxu0
        %v1551 = vld [vmem:[%s774] sm:$0xf]
        %v1552 = vld [vmem:[%s774 + $0x4] sm:$0xf]
        %v1553 = vld [vmem:[%s774 + $0x8] sm:$0xf]
        %v1554 = vld [vmem:[%s774 + $0xc] sm:$0xf]
        %v1555 = vld [vmem:[%s774 + $0x10] sm:$0xf]
        %v1556 = vld [vmem:[%s774 + $0x14] sm:$0xf]
        %v1557 = vld [vmem:[%s774 + $0x18] sm:$0xf]
        %v1558 = vld [vmem:[%s774 + $0x1c] sm:$0xf]
        %v1559 = vld [vmem:[%s774 + $0x20] sm:$0xf]
        %v1560 = vld [vmem:[%s774 + $0x24] sm:$0xf]
        %v1561 = vld [vmem:[%s774 + $0x28] sm:$0xf]
        %v1562 = vld [vmem:[%s774 + $0x2c] sm:$0xf]
        %v1563 = vld [vmem:[%s774 + $0x30] sm:$0xf]
        %v1564 = vld [vmem:[%s774 + $0x34] sm:$0xf]
        %v1565 = vld [vmem:[%s774 + $0x38] sm:$0xf]
        %v1566 = vld [vmem:[%s774 + $0x3c] sm:$0xf]
        %v1583 = vunpack.c.l.b16 %v1551
        %v1584 = vunpack.c.l.b16 %v1552
        %v1585 = vunpack.c.l.b16 %v1553
        %v1586 = vunpack.c.l.b16 %v1554
        %v1587 = vunpack.c.l.b16 %v1555
        %v1588 = vunpack.c.l.b16 %v1556
        %v1589 = vunpack.c.l.b16 %v1557
        %v1590 = vunpack.c.l.b16 %v1558
        %v1591 = vunpack.c.l.b16 %v1559
        %v1592 = vunpack.c.l.b16 %v1560
        %v1593 = vunpack.c.l.b16 %v1561
        %v1594 = vunpack.c.l.b16 %v1562
        %v1595 = vunpack.c.l.b16 %v1563
        %v1596 = vunpack.c.l.b16 %v1564
        %v1597 = vunpack.c.l.b16 %v1565
        %v1598 = vunpack.c.l.b16 %v1566
        %v1599 = vpack.c.b16 %v1584, %v1583
        %v1600 = vpack.c.b16 %v1586, %v1585
        %v1601 = vpack.c.b16 %v1588, %v1587
        %v1602 = vpack.c.b16 %v1590, %v1589
        %v1603 = vpack.c.b16 %v1592, %v1591
        %v1604 = vpack.c.b16 %v1594, %v1593
        %v1605 = vpack.c.b16 %v1596, %v1595
        %v1606 = vpack.c.b16 %v1598, %v1597
        %1615 = vmatpush.bf16.msra.mxu0 %v1606
        %1616 = vmatpush.bf16.msra.mxu0 %v1605
        %1617 = vmatpush.bf16.msra.mxu0 %v1604
        %1618 = vmatpush.bf16.msra.mxu0 %v1603
        %1619 = vmatpush.bf16.msra.mxu0 %v1602
        %1620 = vmatpush.bf16.msra.mxu0 %v1601
        %1621 = vmatpush.bf16.msra.mxu0 %v1600
        %1622 = vmatpush.bf16.msra.mxu0 %v1599
        %1623 = vmatmul.bf16.gmra.mxu0 %v924
        %v1624 = vpop.f32.mrf.mxu0
        %v1625 = vadd.f32 0.0, %v1624
        %v1626 = vpop.f32.mrf.mxu0
        %v1627 = vadd.f32 0.0, %v1626
        %1628 = vmatmul.bf16.gmra.mxu0 %v925
        %v1629 = vpop.f32.mrf.mxu0
        %v1630 = vadd.f32 0.0, %v1629
        %v1631 = vpop.f32.mrf.mxu0
        %v1632 = vadd.f32 0.0, %v1631
        %1633 = vdwg.mxu0
        %v1634 = vpack.c.bf16 %v1627, %v1625
        %v1635 = vpack.c.bf16 %v1632, %v1630
        %v1636 = vld [vmem:[%s784] sm:$0xf]
        %v1637 = vld [vmem:[%s784 + $0x4] sm:$0xf]
        %v1638 = vld [vmem:[%s784 + $0x8] sm:$0xf]
        %v1639 = vld [vmem:[%s784 + $0xc] sm:$0xf]
        %v1640 = vld [vmem:[%s784 + $0x10] sm:$0xf]
        %v1641 = vld [vmem:[%s784 + $0x14] sm:$0xf]
        %v1642 = vld [vmem:[%s784 + $0x18] sm:$0xf]
        %v1643 = vld [vmem:[%s784 + $0x1c] sm:$0xf]
        %v1644 = vld [vmem:[%s784 + $0x20] sm:$0xf]
        %v1645 = vld [vmem:[%s784 + $0x24] sm:$0xf]
        %v1646 = vld [vmem:[%s784 + $0x28] sm:$0xf]
        %v1647 = vld [vmem:[%s784 + $0x2c] sm:$0xf]
        %v1648 = vld [vmem:[%s784 + $0x30] sm:$0xf]
        %v1649 = vld [vmem:[%s784 + $0x34] sm:$0xf]
        %v1650 = vld [vmem:[%s784 + $0x38] sm:$0xf]
        %v1651 = vld [vmem:[%s784 + $0x3c] sm:$0xf]
        %v1668 = vunpack.c.l.b16 %v1636
        %v1669 = vunpack.c.l.b16 %v1637
        %v1670 = vunpack.c.l.b16 %v1638
        %v1671 = vunpack.c.l.b16 %v1639
        %v1672 = vunpack.c.l.b16 %v1640
        %v1673 = vunpack.c.l.b16 %v1641
        %v1674 = vunpack.c.l.b16 %v1642
        %v1675 = vunpack.c.l.b16 %v1643
        %v1676 = vunpack.c.l.b16 %v1644
        %v1677 = vunpack.c.l.b16 %v1645
        %v1678 = vunpack.c.l.b16 %v1646
        %v1679 = vunpack.c.l.b16 %v1647
        %v1680 = vunpack.c.l.b16 %v1648
        %v1681 = vunpack.c.l.b16 %v1649
        %v1682 = vunpack.c.l.b16 %v1650
        %v1683 = vunpack.c.l.b16 %v1651
        %v1684 = vpack.c.b16 %v1669, %v1668
        %v1685 = vpack.c.b16 %v1671, %v1670
        %v1686 = vpack.c.b16 %v1673, %v1672
        %v1687 = vpack.c.b16 %v1675, %v1674
        %v1688 = vpack.c.b16 %v1677, %v1676
        %v1689 = vpack.c.b16 %v1679, %v1678
        %v1690 = vpack.c.b16 %v1681, %v1680
        %v1691 = vpack.c.b16 %v1683, %v1682
        %1700 = vmatpush.bf16.msra.mxu0 %v1691
        %1701 = vmatpush.bf16.msra.mxu0 %v1690
        %1702 = vmatpush.bf16.msra.mxu0 %v1689
        %1703 = vmatpush.bf16.msra.mxu0 %v1688
        %1704 = vmatpush.bf16.msra.mxu0 %v1687
        %1705 = vmatpush.bf16.msra.mxu0 %v1686
        %1706 = vmatpush.bf16.msra.mxu0 %v1685
        %1707 = vmatpush.bf16.msra.mxu0 %v1684
        %1708 = vmatmul.bf16.gmra.mxu0 %v924
        %v1709 = vpop.f32.mrf.mxu0
        %v1710 = vadd.f32 0.0, %v1709
        %v1711 = vpop.f32.mrf.mxu0
        %v1712 = vadd.f32 0.0, %v1711
        %1713 = vmatmul.bf16.gmra.mxu0 %v925
        %v1714 = vpop.f32.mrf.mxu0
        %v1715 = vadd.f32 0.0, %v1714
        %v1716 = vpop.f32.mrf.mxu0
        %v1717 = vadd.f32 0.0, %v1716
        %1718 = vdwg.mxu0
        %v1719 = vpack.c.bf16 %v1712, %v1710
        %v1720 = vpack.c.bf16 %v1717, %v1715
        %v1722 = vsel %vm1455, %v1076, 0
        %v1725 = vsel %vm1455, %v1077, 0
        %1727 = vmatpush.bf16.msra.mxu0 0
        %1728 = vmatpush.bf16.msra.mxu0 0
        %1729 = vmatpush.bf16.msra.mxu0 0
        %1730 = vmatpush.bf16.msra.mxu0 0
        %1731 = vmatpush.bf16.msra.mxu0 0
        %1732 = vmatpush.bf16.msra.mxu0 0
        %1733 = vmatpush.bf16.msra.mxu0 %v1635
        %1734 = vmatpush.bf16.msra.mxu0 %v1634
        %1735 = vmatmul.bf16.gmra.mxu0 %v1722
        %v1736 = vpop.f32.mrf.mxu0
        %v1737 = vadd.f32 0.0, %v1736
        %v1738 = vpop.f32.mrf.mxu0
        %v1739 = vadd.f32 0.0, %v1738
        %1740 = vmatmul.bf16.gmra.mxu0 %v1725
        %v1741 = vpop.f32.mrf.mxu0
        %v1742 = vadd.f32 0.0, %v1741
        %v1743 = vpop.f32.mrf.mxu0
        %v1744 = vadd.f32 0.0, %v1743
        %1745 = vdwg.mxu0
        %v1747 = vsel %vm1455, %v1106, 0
        %v1750 = vsel %vm1455, %v1107, 0
        %1752 = vmatpush.bf16.msra.mxu0 0
        %1753 = vmatpush.bf16.msra.mxu0 0
        %1754 = vmatpush.bf16.msra.mxu0 0
        %1755 = vmatpush.bf16.msra.mxu0 0
        %1756 = vmatpush.bf16.msra.mxu0 0
        %1757 = vmatpush.bf16.msra.mxu0 0
        %1758 = vmatpush.bf16.msra.mxu0 %v1720
        %1759 = vmatpush.bf16.msra.mxu0 %v1719
        %1760 = vmatmul.bf16.gmra.mxu0 %v1747
        %v1761 = vpop.f32.mrf.mxu0
        %v1762 = vadd.f32 0.0, %v1761
        %v1763 = vpop.f32.mrf.mxu0
        %v1764 = vadd.f32 0.0, %v1763
        %1765 = vmatmul.bf16.gmra.mxu0 %v1750
        %v1766 = vpop.f32.mrf.mxu0
        %v1767 = vadd.f32 0.0, %v1766
        %v1768 = vpop.f32.mrf.mxu0
        %v1769 = vadd.f32 0.0, %v1768
        %1770 = vdwg.mxu0
        %v1771 = vmul.f32 %v1737, %v1742
        %v1772 = vmul.f32 %v1739, %v1744
        %1773 = vadd.xlane.f32.xlu0 %v1771
        %v1774 = vpop.xlane.xlu0 %1773
        %1775 = vadd.xlane.f32.xlu0 %v1772
        %v1776 = vpop.xlane.xlu0 %1775
        %1778 = vset.pattern.permute.xlu0 0
        %1779 = vperm.xlu0 %1778, %v1774
        %v1780 = vpop.permute.xlu0 %1779
        %1783 = vset.pattern.permute.xlu0 0
        %1784 = vperm.xlu0 %1783, %v1776
        %v1785 = vpop.permute.xlu0 %1784
        %v1787 = vsel %vm1064, %v1780, -1e+30
        %v1788 = vsel %vm1065, %v1785, -1e+30
        %v1789 = vsel %vm1066, %v1780, -1e+30
        %v1790 = vsel %vm1067, %v1785, -1e+30
        %v1791 = vsel %vm1455, %v1787, -inf
        %v1792 = vsel %vm1455, %v1788, -inf
        %v1793 = vsel %vm1455, %v1789, -inf
        %v1794 = vsel %vm1455, %v1790, -inf
        %v1795 = vmax.f32 %v1791, %v1792
        %v1796 = vmax.f32 %v1793, %v1794
        %v1797 = vmax.f32 %v1795, %v1796
        %v1798 = vrot.slane %v1797, 4
        %v1799 = vmax.f32 %v1797, %v1798
        %v1800 = vrot.slane %v1799, 2
        %v1801 = vmax.f32 %v1799, %v1800
        %v1802 = vrot.slane %v1801, 1
        %v1803 = vmax.f32 %v1801, %v1802
        %v1804 = vsel %vm1064, %v1803, 0.0
        %v1805 = vsel %vm1065, %v1803, 0.0
        %v1806 = vsel %vm1066, %v1803, 0.0
        %v1807 = vsel %vm1067, %v1803, 0.0
        %v1808 = vsel %vm1455, %v1804, 0.0
        %1809 = vadd.xlane.f32.xlu0 %v1808
        %v1810 = vpop.xlane.xlu0 %1809
        %v1811 = vsel %vm1455, %v1805, 0.0
        %1812 = vadd.xlane.f32.xlu0 %v1811
        %v1813 = vpop.xlane.xlu0 %1812
        %v1814 = vsel %vm1455, %v1806, 0.0
        %1815 = vadd.xlane.f32.xlu0 %v1814
        %v1816 = vpop.xlane.xlu0 %1815
        %v1817 = vsel %vm1455, %v1807, 0.0
        %1818 = vadd.xlane.f32.xlu0 %v1817
        %v1819 = vpop.xlane.xlu0 %1818
        %v1820 = vsub.f32 %v1774, %v1810
        %v1821 = vsub.f32 %v1776, %v1813
        %v1822 = vsub.f32 %v1774, %v1816
        %v1823 = vsub.f32 %v1776, %v1819
        %v1824 = vmul.f32 %v1820, 0.17677669
        %v1825 = vmul.f32 %v1821, 0.17677669
        %v1826 = vmul.f32 %v1822, 0.17677669
        %v1827 = vmul.f32 %v1823, 0.17677669
        %v1828 = vmul.f32 %v1824, 1.442695
        %v1829 = vpow.pop %v1828
        %v1830 = vmul.f32 %v1825, 1.442695
        %v1831 = vpow.pop %v1830
        %v1832 = vmul.f32 %v1826, 1.442695
        %v1833 = vpow.pop %v1832
        %v1834 = vmul.f32 %v1827, 1.442695
        %v1835 = vpow.pop %v1834
        %1837 = vset.pattern.permute.xlu0 0
        %1838 = vperm.xlu0 %1837, %v1829
        %v1839 = vpop.permute.xlu0 %1838
        %1842 = vset.pattern.permute.xlu0 0
        %1843 = vperm.xlu0 %1842, %v1831
        %v1844 = vpop.permute.xlu0 %1843
        %1847 = vset.pattern.permute.xlu0 0
        %1848 = vperm.xlu0 %1847, %v1833
        %v1849 = vpop.permute.xlu0 %1848
        %1852 = vset.pattern.permute.xlu0 0
        %1853 = vperm.xlu0 %1852, %v1835
        %v1854 = vpop.permute.xlu0 %1853
        %v1856 = vmul.f32 %v1839, %v1762
        %v1857 = vmul.f32 %v1844, %v1764
        %v1858 = vmul.f32 %v1849, %v1767
        %v1859 = vmul.f32 %v1854, %v1769
        %v1860 = vpack.c.bf16 %v1857, %v1856
        %v1861 = vpack.c.bf16 %v1859, %v1858
        %1862 = vxpose.xlu0.c.b16.start [1/8] %v1076, 128
        %1863 = vxpose.xlu0.c.b16.cont [2/8] %v1077, 128
        %1864 = vxpose.xlu0.c.b16.cont [3/8] 0, 128
        %1865 = vxpose.xlu0.c.b16.cont [4/8] 0, 128
        %1866 = vxpose.xlu0.c.b16.cont [5/8] 0, 128
        %1867 = vxpose.xlu0.c.b16.cont [6/8] 0, 128
        %1868 = vxpose.xlu0.c.b16.cont [7/8] 0, 128
        %1869 = vxpose.xlu0.c.b16.end [8/8] 0, 128
        %v1870 = vpop.trf.xlu0
        %v1871 = vpop.trf.xlu0
        %v1872 = vpop.trf.xlu0
        %v1873 = vpop.trf.xlu0
        %v1874 = vpop.trf.xlu0
        %v1875 = vpop.trf.xlu0
        %v1876 = vpop.trf.xlu0
        %v1877 = vpop.trf.xlu0
        %v1879 = vsel %vm1455, %v1870, 0
        %v1882 = vsel %vm1455, %v1871, 0
        %1884 = vmatpush.bf16.msra.mxu0 0
        %1885 = vmatpush.bf16.msra.mxu0 0
        %1886 = vmatpush.bf16.msra.mxu0 0
        %1887 = vmatpush.bf16.msra.mxu0 0
        %1888 = vmatpush.bf16.msra.mxu0 0
        %1889 = vmatpush.bf16.msra.mxu0 0
        %1890 = vmatpush.bf16.msra.mxu0 %v1861
        %1891 = vmatpush.bf16.msra.mxu0 %v1860
        %1892 = vmatmul.bf16.gmra.mxu0 %v1879
        %v1893 = vpop.f32.mrf.mxu0
        %v1894 = vadd.f32 0.0, %v1893
        %v1895 = vpop.f32.mrf.mxu0
        %v1896 = vadd.f32 0.0, %v1895
        %1897 = vmatmul.bf16.gmra.mxu0 %v1882
        %v1898 = vpop.f32.mrf.mxu0
        %v1899 = vadd.f32 0.0, %v1898
        %v1900 = vpop.f32.mrf.mxu0
        %v1901 = vadd.f32 0.0, %v1900
        %1902 = vdwg.mxu0
        %1903 = vxpose.xlu0.b32.start [1/16] %v1072, 128
        %1904 = vxpose.xlu0.b32.cont [2/16] %v1073, 128
        %1905 = vxpose.xlu0.b32.cont [3/16] %v1074, 128
        %1906 = vxpose.xlu0.b32.cont [4/16] %v1075, 128
        %1907 = vxpose.xlu0.b32.cont [5/16] 0.0, 128
        %1908 = vxpose.xlu0.b32.cont [6/16] 0.0, 128
        %1909 = vxpose.xlu0.b32.cont [7/16] 0.0, 128
        %1910 = vxpose.xlu0.b32.cont [8/16] 0.0, 128
        %1911 = vxpose.xlu0.b32.cont [9/16] 0.0, 128
        %1912 = vxpose.xlu0.b32.cont [10/16] 0.0, 128
        %1913 = vxpose.xlu0.b32.cont [11/16] 0.0, 128
        %1914 = vxpose.xlu0.b32.cont [12/16] 0.0, 128
        %1915 = vxpose.xlu0.b32.cont [13/16] 0.0, 128
        %1916 = vxpose.xlu0.b32.cont [14/16] 0.0, 128
        %1917 = vxpose.xlu0.b32.cont [15/16] 0.0, 128
        %1918 = vxpose.xlu0.b32.end [16/16] 0.0, 128
        %v1919 = vpop.trf.xlu0
        %v1920 = vpop.trf.xlu0
        %v1921 = vpop.trf.xlu0
        %v1922 = vpop.trf.xlu0
        %v1923 = vpop.trf.xlu0
        %v1924 = vpop.trf.xlu0
        %v1925 = vpop.trf.xlu0
        %v1926 = vpop.trf.xlu0
        %v1927 = vpop.trf.xlu0
        %v1928 = vpop.trf.xlu0
        %v1929 = vpop.trf.xlu0
        %v1930 = vpop.trf.xlu0
        %v1931 = vpop.trf.xlu0
        %v1932 = vpop.trf.xlu0
        %v1933 = vpop.trf.xlu0
        %v1934 = vpop.trf.xlu0
        %v1936 = vsel %vm1455, %v1919, 0
        %v1939 = vsel %vm1455, %v1920, 0
        %v1942 = vsel %vm1455, %v1921, 0
        %v1945 = vsel %vm1455, %v1922, 0
        %1947 = vmatpush.msra.mxu0 0.0
        %1948 = vmatpush.msra.mxu0 0.0
        %1949 = vmatpush.msra.mxu0 0.0
        %1950 = vmatpush.msra.mxu0 0.0
        %1951 = vmatpush.msra.mxu0 0.0
        %1952 = vmatpush.msra.mxu0 0.0
        %1953 = vmatpush.msra.mxu0 0.0
        %1954 = vmatpush.msra.mxu0 0.0
        %1955 = vmatpush.msra.mxu0 0.0
        %1956 = vmatpush.msra.mxu0 0.0
        %1957 = vmatpush.msra.mxu0 0.0
        %1958 = vmatpush.msra.mxu0 0.0
        %1959 = vmatpush.msra.mxu0 %v1835
        %1960 = vmatpush.msra.mxu0 %v1833
        %1961 = vmatpush.msra.mxu0 %v1831
        %1962 = vmatpush.msra.mxu0 %v1829
        %1963 = vmatmul.f32.gmra.mxu0 %v1936
        %v1964 = vpop.f32.mrf.mxu0
        %v1965 = vadd.f32 1e-08, %v1964
        %1966 = vmatmul.f32.gmra.mxu0 %v1939
        %v1967 = vpop.f32.mrf.mxu0
        %v1968 = vadd.f32 1e-08, %v1967
        %1969 = vmatmul.f32.gmra.mxu0 %v1942
        %v1970 = vpop.f32.mrf.mxu0
        %v1971 = vadd.f32 1e-08, %v1970
        %1972 = vmatmul.f32.gmra.mxu0 %v1945
        %v1973 = vpop.f32.mrf.mxu0
        %v1974 = vadd.f32 1e-08, %v1973
        %1975 = vdwg.mxu0
        %v1976 = vrcp.pop %v1965
        %v1977 = vmul.f32 %v1965, %v1976
        %v1978 = vsub.f32 1.0, %v1977
        %v1979 = vmul.f32 %v1976, %v1978
        %v1980 = vadd.f32 %v1976, %v1979
        %vm1981 = vweird.f32 %v1965
        %vm1982 = vweird.f32 %v1976
        %vm1983 = vmor %vm1981, %vm1982
        %v1984 = vsel %vm1983, %v1976, %v1980
        %v1985 = vand.u32 2147483647, %v1965
        %vm1986 = vcmp.eq.f32.partialorder %v1985, 8.507059e+37
        %v1987 = vand.u32 %v1965, 2147483648
        %v1988 = vor.u32 1.1754944e-38, %v1987
        %v1989 = vsel %vm1986, %v1988, %v1984
        %v1990 = vrcp.pop %v1968
        %v1991 = vmul.f32 %v1968, %v1990
        %v1992 = vsub.f32 1.0, %v1991
        %v1993 = vmul.f32 %v1990, %v1992
        %v1994 = vadd.f32 %v1990, %v1993
        %vm1995 = vweird.f32 %v1968
        %vm1996 = vweird.f32 %v1990
        %vm1997 = vmor %vm1995, %vm1996
        %v1998 = vsel %vm1997, %v1990, %v1994
        %v1999 = vand.u32 2147483647, %v1968
        %vm2000 = vcmp.eq.f32.partialorder %v1999, 8.507059e+37
        %v2001 = vand.u32 %v1968, 2147483648
        %v2002 = vor.u32 1.1754944e-38, %v2001
        %v2003 = vsel %vm2000, %v2002, %v1998
        %v2004 = vrcp.pop %v1971
        %v2005 = vmul.f32 %v1971, %v2004
        %v2006 = vsub.f32 1.0, %v2005
        %v2007 = vmul.f32 %v2004, %v2006
        %v2008 = vadd.f32 %v2004, %v2007
        %vm2009 = vweird.f32 %v1971
        %vm2010 = vweird.f32 %v2004
        %vm2011 = vmor %vm2009, %vm2010
        %v2012 = vsel %vm2011, %v2004, %v2008
        %v2013 = vand.u32 2147483647, %v1971
        %vm2014 = vcmp.eq.f32.partialorder %v2013, 8.507059e+37
        %v2015 = vand.u32 %v1971, 2147483648
        %v2016 = vor.u32 1.1754944e-38, %v2015
        %v2017 = vsel %vm2014, %v2016, %v2012
        %v2018 = vrcp.pop %v1974
        %v2019 = vmul.f32 %v1974, %v2018
        %v2020 = vsub.f32 1.0, %v2019
        %v2021 = vmul.f32 %v2018, %v2020
        %v2022 = vadd.f32 %v2018, %v2021
        %vm2023 = vweird.f32 %v1974
        %vm2024 = vweird.f32 %v2018
        %vm2025 = vmor %vm2023, %vm2024
        %v2026 = vsel %vm2025, %v2018, %v2022
        %v2027 = vand.u32 2147483647, %v1974
        %vm2028 = vcmp.eq.f32.partialorder %v2027, 8.507059e+37
        %v2029 = vand.u32 %v1974, 2147483648
        %v2030 = vor.u32 1.1754944e-38, %v2029
        %v2031 = vsel %vm2028, %v2030, %v2026
        %2033 = vset.pattern.permute.xlu0 0
        %2034 = vperm.xlu0 %2033, %v1989
        %v2035 = vpop.permute.xlu0 %2034
        %2038 = vset.pattern.permute.xlu0 0
        %2039 = vperm.xlu0 %2038, %v2003
        %v2040 = vpop.permute.xlu0 %2039
        %2043 = vset.pattern.permute.xlu0 0
        %2044 = vperm.xlu0 %2043, %v2017
        %v2045 = vpop.permute.xlu0 %2044
        %2048 = vset.pattern.permute.xlu0 0
        %2049 = vperm.xlu0 %2048, %v2031
        %v2050 = vpop.permute.xlu0 %2049
        %v2052 = vmul.f32 %v1894, %v2035
        %v2053 = vmul.f32 %v1896, %v2040
        %v2054 = vmul.f32 %v1899, %v2045
        %v2055 = vmul.f32 %v1901, %v2050
        %v2056 = vpack.c.bf16 %v2053, %v2052
        %v2057 = vpack.c.bf16 %v2055, %v2054
        %v2058 = vld [vmem:[%s794] sm:$0xf]
        %v2059 = vld [vmem:[%s794 + $0x4] sm:$0xf]
        %v2060 = vld [vmem:[%s794 + $0x8] sm:$0xf]
        %v2061 = vld [vmem:[%s794 + $0xc] sm:$0xf]
        %v2062 = vld [vmem:[%s794 + $0x10] sm:$0xf]
        %v2063 = vld [vmem:[%s794 + $0x14] sm:$0xf]
        %v2064 = vld [vmem:[%s794 + $0x18] sm:$0xf]
        %v2065 = vld [vmem:[%s794 + $0x1c] sm:$0xf]
        %v2066 = vld [vmem:[%s794 + $0x20] sm:$0xf]
        %v2067 = vld [vmem:[%s794 + $0x24] sm:$0xf]
        %v2068 = vld [vmem:[%s794 + $0x28] sm:$0xf]
        %v2069 = vld [vmem:[%s794 + $0x2c] sm:$0xf]
        %v2070 = vld [vmem:[%s794 + $0x30] sm:$0xf]
        %v2071 = vld [vmem:[%s794 + $0x34] sm:$0xf]
        %v2072 = vld [vmem:[%s794 + $0x38] sm:$0xf]
        %v2073 = vld [vmem:[%s794 + $0x3c] sm:$0xf]
        %v2074 = vld [vmem:[%s900] sm:$0x1]
        %v2076 = vperm.slane %v2074, 0
        %v2094 = vunpack.c.l.b16 %v2058
        %v2095 = vunpack.c.l.b16 %v2059
        %v2096 = vunpack.c.l.b16 %v2060
        %v2097 = vunpack.c.l.b16 %v2061
        %v2098 = vunpack.c.l.b16 %v2062
        %v2099 = vunpack.c.l.b16 %v2063
        %v2100 = vunpack.c.l.b16 %v2064
        %v2101 = vunpack.c.l.b16 %v2065
        %v2102 = vunpack.c.l.b16 %v2066
        %v2103 = vunpack.c.l.b16 %v2067
        %v2104 = vunpack.c.l.b16 %v2068
        %v2105 = vunpack.c.l.b16 %v2069
        %v2106 = vunpack.c.l.b16 %v2070
        %v2107 = vunpack.c.l.b16 %v2071
        %v2108 = vunpack.c.l.b16 %v2072
        %v2109 = vunpack.c.l.b16 %v2073
        %v2110 = vpack.c.b16 %v2095, %v2094
        %v2111 = vpack.c.b16 %v2097, %v2096
        %v2112 = vpack.c.b16 %v2099, %v2098
        %v2113 = vpack.c.b16 %v2101, %v2100
        %v2114 = vpack.c.b16 %v2103, %v2102
        %v2115 = vpack.c.b16 %v2105, %v2104
        %v2116 = vpack.c.b16 %v2107, %v2106
        %v2117 = vpack.c.b16 %v2109, %v2108
        %2126 = vmatpush.bf16.msra.mxu0 %v2117
        %2127 = vmatpush.bf16.msra.mxu0 %v2116
        %2128 = vmatpush.bf16.msra.mxu0 %v2115
        %2129 = vmatpush.bf16.msra.mxu0 %v2114
        %2130 = vmatpush.bf16.msra.mxu0 %v2113
        %2131 = vmatpush.bf16.msra.mxu0 %v2112
        %2132 = vmatpush.bf16.msra.mxu0 %v2111
        %2133 = vmatpush.bf16.msra.mxu0 %v2110
        %2134 = vmatmul.bf16.gmra.mxu0 %v2056
        %v2135 = vpop.f32.mrf.mxu0
        %v2136 = vadd.f32 %v2076, %v2135
        %v2137 = vpop.f32.mrf.mxu0
        %v2138 = vadd.f32 %v2076, %v2137
        %2139 = vmatmul.bf16.gmra.mxu0 %v2057
        %v2140 = vpop.f32.mrf.mxu0
        %v2141 = vadd.f32 %v2076, %v2140
        %v2142 = vpop.f32.mrf.mxu0
        %v2143 = vadd.f32 %v2076, %v2142
        %2144 = vdwg.mxu0
        %v2145 = vmul.f32 %v2136, 0.01
        %v2146 = vmul.f32 %v2138, 0.01
        %v2147 = vmul.f32 %v2141, 0.01
        %v2148 = vmul.f32 %v2143, 0.01
        %v2149 = vmax.f32 %v2136, %v2145
        %v2150 = vmax.f32 %v2138, %v2146
        %v2151 = vmax.f32 %v2141, %v2147
        %v2152 = vmax.f32 %v2143, %v2148
        %v2153 = vadd.f32 %v920, %v1542
        %v2154 = vadd.f32 %v921, %v1544
        %v2155 = vadd.f32 %v922, %v1547
        %v2156 = vadd.f32 %v923, %v1549
        %v2157 = vadd.f32 %v2153, %v2149
        %v2158 = vadd.f32 %v2154, %v2150
        %v2159 = vadd.f32 %v2155, %v2151
        %v2160 = vadd.f32 %v2156, %v2152
        %2161 = vadd.xlane.f32.xlu0 %v2157
        %v2162 = vpop.xlane.xlu0 %2161
        %2163 = vadd.xlane.f32.xlu0 %v2158
        %v2164 = vpop.xlane.xlu0 %2163
        %2165 = vadd.xlane.f32.xlu0 %v2159
        %v2166 = vpop.xlane.xlu0 %2165
        %2167 = vadd.xlane.f32.xlu0 %v2160
        %v2168 = vpop.xlane.xlu0 %2167
        %v2169 = vmul.f32 %v2162, 0.03125
        %v2170 = vmul.f32 %v2164, 0.03125
        %v2171 = vmul.f32 %v2166, 0.03125
        %v2172 = vmul.f32 %v2168, 0.03125
        %v2173 = vmul.f32 %v2157, %v2157
        %v2174 = vmul.f32 %v2158, %v2158
        %v2175 = vmul.f32 %v2159, %v2159
        %v2176 = vmul.f32 %v2160, %v2160
        %2177 = vadd.xlane.f32.xlu0 %v2173
        %v2178 = vpop.xlane.xlu0 %2177
        %2179 = vadd.xlane.f32.xlu0 %v2174
        %v2180 = vpop.xlane.xlu0 %2179
        %2181 = vadd.xlane.f32.xlu0 %v2175
        %v2182 = vpop.xlane.xlu0 %2181
        %2183 = vadd.xlane.f32.xlu0 %v2176
        %v2184 = vpop.xlane.xlu0 %2183
        %v2185 = vmul.f32 %v2178, 0.03125
        %v2186 = vmul.f32 %v2180, 0.03125
        %v2187 = vmul.f32 %v2182, 0.03125
        %v2188 = vmul.f32 %v2184, 0.03125
        %v2189 = vmul.f32 %v2169, %v2169
        %v2190 = vmul.f32 %v2170, %v2170
        %v2191 = vmul.f32 %v2171, %v2171
        %v2192 = vmul.f32 %v2172, %v2172
        %v2193 = vsub.f32 %v2185, %v2189
        %v2194 = vsub.f32 %v2186, %v2190
        %v2195 = vsub.f32 %v2187, %v2191
        %v2196 = vsub.f32 %v2188, %v2192
        %v2197 = vsub.f32 %v2157, %v2169
        %v2198 = vsub.f32 %v2158, %v2170
        %v2199 = vsub.f32 %v2159, %v2171
        %v2200 = vsub.f32 %v2160, %v2172
        %v2201 = vadd.f32 %v2193, 1e-05
        %v2202 = vadd.f32 %v2194, 1e-05
        %v2203 = vadd.f32 %v2195, 1e-05
        %v2204 = vadd.f32 %v2196, 1e-05
        %v2205 = vrsqrt.pop %v2201
        %v2206 = vmul.f32 %v2205, %v2201
        %v2207 = vmul.f32 %v2206, %v2205
        %v2208 = vmul.f32 0.5, %v2207
        %v2209 = vsub.f32 1.5, %v2208
        %v2210 = vmul.f32 %v2205, %v2209
        %vm2211 = vweird.f32 %v2201
        %vm2212 = vweird.f32 %v2205
        %vm2213 = vmor %vm2211, %vm2212
        %v2214 = vsel %vm2213, %v2205, %v2210
        %v2215 = vrsqrt.pop %v2202
        %v2216 = vmul.f32 %v2215, %v2202
        %v2217 = vmul.f32 %v2216, %v2215
        %v2218 = vmul.f32 0.5, %v2217
        %v2219 = vsub.f32 1.5, %v2218
        %v2220 = vmul.f32 %v2215, %v2219
        %vm2221 = vweird.f32 %v2202
        %vm2222 = vweird.f32 %v2215
        %vm2223 = vmor %vm2221, %vm2222
        %v2224 = vsel %vm2223, %v2215, %v2220
        %v2225 = vrsqrt.pop %v2203
        %v2226 = vmul.f32 %v2225, %v2203
        %v2227 = vmul.f32 %v2226, %v2225
        %v2228 = vmul.f32 0.5, %v2227
        %v2229 = vsub.f32 1.5, %v2228
        %v2230 = vmul.f32 %v2225, %v2229
        %vm2231 = vweird.f32 %v2203
        %vm2232 = vweird.f32 %v2225
        %vm2233 = vmor %vm2231, %vm2232
        %v2234 = vsel %vm2233, %v2225, %v2230
        %v2235 = vrsqrt.pop %v2204
        %v2236 = vmul.f32 %v2235, %v2204
        %v2237 = vmul.f32 %v2236, %v2235
        %v2238 = vmul.f32 0.5, %v2237
        %v2239 = vsub.f32 1.5, %v2238
        %v2240 = vmul.f32 %v2235, %v2239
        %vm2241 = vweird.f32 %v2204
        %vm2242 = vweird.f32 %v2235
        %vm2243 = vmor %vm2241, %vm2242
        %v2244 = vsel %vm2243, %v2235, %v2240
        %v2245 = vmul.f32 %v2197, %v2214
        %v2246 = vmul.f32 %v2198, %v2224
        %v2247 = vmul.f32 %v2199, %v2234
        %v2248 = vmul.f32 %v2200, %v2244
        %v2249 = vld [vmem:[%s903] sm:$0x1]
        %v2251 = vperm.slane %v2249, 0
        %v2253 = vmul.f32 %v2245, %v2251
        %v2254 = vmul.f32 %v2246, %v2251
        %v2255 = vmul.f32 %v2247, %v2251
        %v2256 = vmul.f32 %v2248, %v2251
        %v2257 = vld [vmem:[%s906] sm:$0x1]
        %v2259 = vperm.slane %v2257, 0
        %v2261 = vadd.f32 %v2253, %v2259
        %v2262 = vadd.f32 %v2254, %v2259
        %v2263 = vadd.f32 %v2255, %v2259
        %v2264 = vadd.f32 %v2256, %v2259
        %2265 = vst [vmem:[#allocation2] sm:$0xff] %v2261
        %2266 = vst [vmem:[#allocation2 + $0x8] sm:$0xff] %v2262
        %2267 = vst [vmem:[#allocation2 + $0x10] sm:$0xff] %v2263
        %2268 = vst [vmem:[#allocation2 + $0x18] sm:$0xff] %v2264
        %p2269 = scmp.eq.s32.totalorder %s42, 1
        // Predicated region
        $region129: #{tpu_custom_call.1} parent=99 // pred_check
          %p2270 = pneg %p2269
        $region130: #{tpu_custom_call.1} parent=99 // pred_check_branch
          %2272 = sbr.rel (%p2270) target = $region132
        $region131: #{tpu_custom_call.1} parent=99 // pred_region
          %v2273 = vld [vmem:[%s6] sm:$0xff]
          %v2274 = vld [vmem:[%s6 + $0x8] sm:$0xff]
          %v2275 = vld [vmem:[%s6 + $0x10] sm:$0xff]
          %v2276 = vld [vmem:[%s6 + $0x18] sm:$0xff]
          %2277 = vset.pattern.permute.xlu0 0
          %2278 = vperm.xlu0 %2277, %v2273
          %v2279 = vpop.permute.xlu0 %2278
          %2280 = vset.pattern.permute.xlu0 0
          %2281 = vperm.xlu0 %2280, %v2274
          %v2282 = vpop.permute.xlu0 %2281
          %2283 = vset.pattern.permute.xlu0 0
          %2284 = vperm.xlu0 %2283, %v2275
          %v2285 = vpop.permute.xlu0 %2284
          %2286 = vset.pattern.permute.xlu0 0
          %2287 = vperm.xlu0 %2286, %v2276
          %v2288 = vpop.permute.xlu0 %2287
          %vm2289 = vcmp.eq.s32.totalorder %v2279, %v935
          %vm2290 = vcmp.eq.s32.totalorder %v2282, %v935
          %vm2291 = vcmp.eq.s32.totalorder %v2285, %v935
          %vm2292 = vcmp.eq.s32.totalorder %v2288, %v935
          %v2293 = vsel %vm2289, 1, 0
          %v2294 = vsel %vm2290, 1, 0
          %v2295 = vsel %vm2291, 1, 0
          %v2296 = vsel %vm2292, 1, 0
          %v2297 = vcvt.s32.f32 %v2293
          %v2298 = vcvt.s32.f32 %v2294
          %v2299 = vcvt.s32.f32 %v2295
          %v2300 = vcvt.s32.f32 %v2296
          %v2301 = vpack.c.bf16 %v2298, %v2297
          %v2302 = vpack.c.bf16 %v2300, %v2299
          %v2303 = vpack.c.bf16 %v2262, %v2261
          %v2304 = vpack.c.bf16 %v2264, %v2263
          %v2305 = vld [vmem:[%s18] sm:$0xf]
          %v2306 = vld [vmem:[%s18 + $0x4] sm:$0xf]
          %v2307 = vld [vmem:[%s18 + $0x8] sm:$0xf]
          %v2308 = vld [vmem:[%s18 + $0xc] sm:$0xf]
          %v2309 = vld [vmem:[%s18 + $0x10] sm:$0xf]
          %v2310 = vld [vmem:[%s18 + $0x14] sm:$0xf]
          %v2311 = vld [vmem:[%s18 + $0x18] sm:$0xf]
          %v2312 = vld [vmem:[%s18 + $0x1c] sm:$0xf]
          %v2313 = vld [vmem:[%s18 + $0x20] sm:$0xf]
          %v2314 = vld [vmem:[%s18 + $0x24] sm:$0xf]
          %v2315 = vld [vmem:[%s18 + $0x28] sm:$0xf]
          %v2316 = vld [vmem:[%s18 + $0x2c] sm:$0xf]
          %v2317 = vld [vmem:[%s18 + $0x30] sm:$0xf]
          %v2318 = vld [vmem:[%s18 + $0x34] sm:$0xf]
          %v2319 = vld [vmem:[%s18 + $0x38] sm:$0xf]
          %v2320 = vld [vmem:[%s18 + $0x3c] sm:$0xf]
          %v2321 = vld [vmem:[%s19] sm:$0x1]
          %v2323 = vperm.slane %v2321, 0
          %v2341 = vunpack.c.l.b16 %v2305
          %v2342 = vunpack.c.l.b16 %v2306
          %v2343 = vunpack.c.l.b16 %v2307
          %v2344 = vunpack.c.l.b16 %v2308
          %v2345 = vunpack.c.l.b16 %v2309
          %v2346 = vunpack.c.l.b16 %v2310
          %v2347 = vunpack.c.l.b16 %v2311
          %v2348 = vunpack.c.l.b16 %v2312
          %v2349 = vunpack.c.l.b16 %v2313
          %v2350 = vunpack.c.l.b16 %v2314
          %v2351 = vunpack.c.l.b16 %v2315
          %v2352 = vunpack.c.l.b16 %v2316
          %v2353 = vunpack.c.l.b16 %v2317
          %v2354 = vunpack.c.l.b16 %v2318
          %v2355 = vunpack.c.l.b16 %v2319
          %v2356 = vunpack.c.l.b16 %v2320
          %v2357 = vpack.c.b16 %v2342, %v2341
          %v2358 = vpack.c.b16 %v2344, %v2343
          %v2359 = vpack.c.b16 %v2346, %v2345
          %v2360 = vpack.c.b16 %v2348, %v2347
          %v2361 = vpack.c.b16 %v2350, %v2349
          %v2362 = vpack.c.b16 %v2352, %v2351
          %v2363 = vpack.c.b16 %v2354, %v2353
          %v2364 = vpack.c.b16 %v2356, %v2355
          %2373 = vmatpush.bf16.msra.mxu0 %v2364
          %2374 = vmatpush.bf16.msra.mxu0 %v2363
          %2375 = vmatpush.bf16.msra.mxu0 %v2362
          %2376 = vmatpush.bf16.msra.mxu0 %v2361
          %2377 = vmatpush.bf16.msra.mxu0 %v2360
          %2378 = vmatpush.bf16.msra.mxu0 %v2359
          %2379 = vmatpush.bf16.msra.mxu0 %v2358
          %2380 = vmatpush.bf16.msra.mxu0 %v2357
          %2381 = vmatmul.bf16.gmra.mxu0 %v2303
          %v2382 = vpop.f32.mrf.mxu0
          %v2383 = vadd.f32 %v2323, %v2382
          %v2384 = vpop.f32.mrf.mxu0
          %v2385 = vadd.f32 %v2323, %v2384
          %2386 = vmatmul.bf16.gmra.mxu0 %v2304
          %v2387 = vpop.f32.mrf.mxu0
          %v2388 = vadd.f32 %v2323, %v2387
          %v2389 = vpop.f32.mrf.mxu0
          %v2390 = vadd.f32 %v2323, %v2389
          %2391 = vdwg.mxu0
          %v2392 = vmul.f32 %v2383, 0.01
          %v2393 = vmul.f32 %v2385, 0.01
          %v2394 = vmul.f32 %v2388, 0.01
          %v2395 = vmul.f32 %v2390, 0.01
          %v2396 = vmax.f32 %v2383, %v2392
          %v2397 = vmax.f32 %v2385, %v2393
          %v2398 = vmax.f32 %v2388, %v2394
          %v2399 = vmax.f32 %v2390, %v2395
          %v2400 = vpack.c.bf16 %v2397, %v2396
          %v2401 = vpack.c.bf16 %v2399, %v2398
          %2402 = vxpose.xlu0.c.b16.start [1/8] %v2301, 128
          %2403 = vxpose.xlu0.c.b16.cont [2/8] %v2302, 128
          %2404 = vxpose.xlu0.c.b16.cont [3/8] 0, 128
          %2405 = vxpose.xlu0.c.b16.cont [4/8] 0, 128
          %2406 = vxpose.xlu0.c.b16.cont [5/8] 0, 128
          %2407 = vxpose.xlu0.c.b16.cont [6/8] 0, 128
          %2408 = vxpose.xlu0.c.b16.cont [7/8] 0, 128
          %2409 = vxpose.xlu0.c.b16.end [8/8] 0, 128
          %v2410 = vpop.trf.xlu0
          %v2411 = vpop.trf.xlu0
          %v2412 = vpop.trf.xlu0
          %v2413 = vpop.trf.xlu0
          %v2414 = vpop.trf.xlu0
          %v2415 = vpop.trf.xlu0
          %v2416 = vpop.trf.xlu0
          %v2417 = vpop.trf.xlu0
          %v2419 = vsel %vm1455, %v2410, 0
          %v2422 = vsel %vm1455, %v2411, 0
          %v2425 = vsel %vm1455, %v2412, 0
          %v2428 = vsel %vm1455, %v2413, 0
          %v2431 = vsel %vm1455, %v2414, 0
          %v2434 = vsel %vm1455, %v2415, 0
          %v2437 = vsel %vm1455, %v2416, 0
          %v2440 = vsel %vm1455, %v2417, 0
          %2442 = vmatpush.bf16.msra.mxu0 0
          %2443 = vmatpush.bf16.msra.mxu0 0
          %2444 = vmatpush.bf16.msra.mxu0 0
          %2445 = vmatpush.bf16.msra.mxu0 0
          %2446 = vmatpush.bf16.msra.mxu0 0
          %2447 = vmatpush.bf16.msra.mxu0 0
          %2448 = vmatpush.bf16.msra.mxu0 %v2401
          %2449 = vmatpush.bf16.msra.mxu0 %v2400
          %2450 = vmatmul.bf16.gmra.mxu0 %v2419
          %v2451 = vpop.f32.mrf.mxu0
          %v2452 = vadd.f32 0.0, %v2451
          %v2453 = vpop.f32.mrf.mxu0
          %v2454 = vadd.f32 0.0, %v2453
          %2455 = vmatmul.bf16.gmra.mxu0 %v2422
          %v2456 = vpop.f32.mrf.mxu0
          %v2457 = vadd.f32 0.0, %v2456
          %v2458 = vpop.f32.mrf.mxu0
          %v2459 = vadd.f32 0.0, %v2458
          %2460 = vmatmul.bf16.gmra.mxu0 %v2425
          %v2461 = vpop.f32.mrf.mxu0
          %v2462 = vadd.f32 0.0, %v2461
          %v2463 = vpop.f32.mrf.mxu0
          %v2464 = vadd.f32 0.0, %v2463
          %2465 = vmatmul.bf16.gmra.mxu0 %v2428
          %v2466 = vpop.f32.mrf.mxu0
          %v2467 = vadd.f32 0.0, %v2466
          %v2468 = vpop.f32.mrf.mxu0
          %v2469 = vadd.f32 0.0, %v2468
          %2470 = vmatmul.bf16.gmra.mxu0 %v2431
          %v2471 = vpop.f32.mrf.mxu0
          %v2472 = vadd.f32 0.0, %v2471
          %v2473 = vpop.f32.mrf.mxu0
          %v2474 = vadd.f32 0.0, %v2473
          %2475 = vmatmul.bf16.gmra.mxu0 %v2434
          %v2476 = vpop.f32.mrf.mxu0
          %v2477 = vadd.f32 0.0, %v2476
          %v2478 = vpop.f32.mrf.mxu0
          %v2479 = vadd.f32 0.0, %v2478
          %2480 = vmatmul.bf16.gmra.mxu0 %v2437
          %v2481 = vpop.f32.mrf.mxu0
          %v2482 = vadd.f32 0.0, %v2481
          %v2483 = vpop.f32.mrf.mxu0
          %v2484 = vadd.f32 0.0, %v2483
          %2485 = vmatmul.bf16.gmra.mxu0 %v2440
          %v2486 = vpop.f32.mrf.mxu0
          %v2487 = vadd.f32 0.0, %v2486
          %v2488 = vpop.f32.mrf.mxu0
          %v2489 = vadd.f32 0.0, %v2488
          %2490 = vdwg.mxu0
          %2491 = vst [vmem:[#allocation14] sm:$0xff] %v2452
          %2492 = vst [vmem:[#allocation14 + $0x8] sm:$0xff] %v2454
          %2493 = vst [vmem:[#allocation14 + $0x10] sm:$0xff] %v2457
          %2494 = vst [vmem:[#allocation14 + $0x18] sm:$0xff] %v2459
          %2495 = vst [vmem:[#allocation14 + $0x20] sm:$0xff] %v2462
          %2496 = vst [vmem:[#allocation14 + $0x28] sm:$0xff] %v2464
          %2497 = vst [vmem:[#allocation14 + $0x30] sm:$0xff] %v2467
          %2498 = vst [vmem:[#allocation14 + $0x38] sm:$0xff] %v2469
          %2499 = vst [vmem:[#allocation14 + $0x40] sm:$0xff] %v2472
          %2500 = vst [vmem:[#allocation14 + $0x48] sm:$0xff] %v2474
          %2501 = vst [vmem:[#allocation14 + $0x50] sm:$0xff] %v2477
          %2502 = vst [vmem:[#allocation14 + $0x58] sm:$0xff] %v2479
          %2503 = vst [vmem:[#allocation14 + $0x60] sm:$0xff] %v2482
          %2504 = vst [vmem:[#allocation14 + $0x68] sm:$0xff] %v2484
          %2505 = vst [vmem:[#allocation14 + $0x70] sm:$0xff] %v2487
          %2506 = vst [vmem:[#allocation14 + $0x78] sm:$0xff] %v2489
        $region132: #{tpu_custom_call.1} parent=99 // pred_fallthru
          _
        // Predicated region
        $region133: #{tpu_custom_call.1} parent=99 // pred_check
          %p2507 = pneg %p530
        $region134: #{tpu_custom_call.1} parent=99 // pred_check_branch
          %2509 = sbr.rel (%p2507) target = $region136
        $region135: #{tpu_custom_call.1} parent=99 // pred_region
          %2511 = vsyncadd [#allocation5], 0
          %s2512 = sshll.u32 [#allocation14], 4
          %s2513 = int_to_ptr.vmem [resolvable:$true] %s2512
          %s2514 = sshll.u32 %s20, 4
          %s2515 = int_to_ptr.hbm [resolvable:$true] %s2514
          %2520 = dma.vmem_to_hbm [thread:$0]  %s2513, 2048, %s2515, [#allocation5], 128, 128, 8
        $region136: #{tpu_custom_call.1} parent=99 // pred_fallthru
          _
        // Predicated region
        $region137: #{tpu_custom_call.1} parent=99 // pred_check
          %p2521 = pneg %p530
        $region138: #{tpu_custom_call.1} parent=99 // pred_check_branch
          %2523 = sbr.rel (%p2521) target = $region140
        $region139: #{tpu_custom_call.1} parent=99 // pred_region
          %2525 = dma.done [#allocation5], 2048
        $region140: #{tpu_custom_call.1} parent=99 // pred_fallthru
          _
      $region100: #{tpu_custom_call.1} parent=5 // pred_fallthru
        _
      %p2526 = scmp.le.s32.totalorder 2, %s37
      // Predicated region
      $region141: #{tpu_custom_call.1} parent=5 // pred_check
        %p2527 = pneg %p2526
      $region142: #{tpu_custom_call.1} parent=5 // pred_check_branch
        %2529 = sbr.rel (%p2527) target = $region144
      $region143: #{tpu_custom_call.1} parent=5 // pred_region
        %s2530 = ssub.s32 %s37, 2
      $region144: #{tpu_custom_call.1} parent=5 // pred_fallthru
        _
    $region6: #{tpu_custom_call.1} parent=1 // loop_footer
      %s41 = sadd.s32 1, %s37
    $region7: #{tpu_custom_call.1} parent=1 // loop_footer_branch
      %36 = sbr.rel target = $region3
    $region8: #{tpu_custom_call.1} parent=1 // loop_exit
      _
    %2531 = vsyncpa [#allocation4], 1
    %s2532 = scalar_lea.sflag [#allocation4], 1
    %2533 = vsyncpa %s2532, 1
    %2534 = vsyncpa [#allocation7], 1
    %s2535 = scalar_lea.sflag [#allocation7], 1
    %2536 = vsyncpa %s2535, 1
    %2537 = vsyncpa [#allocation10], 1
    %s2538 = scalar_lea.sflag [#allocation10], 1
    %2539 = vsyncpa %s2538, 1
    %2540 = vsyncpa [#allocation13], 1
    %s2541 = scalar_lea.sflag [#allocation13], 1
    %2542 = vsyncpa %s2541, 1
    %2543 = vsyncpa [#allocation5], 1
    %s2544 = scalar_lea.sflag [#allocation5], 1
    %2545 = vsyncpa %s2544, 1

</llo_original>
